<compile_context>
chip_gen: v7x
topology: tpu7x:2x2x1
jax: 0.10.0
libtpu: 0.0.40
codegen_flags: <defaults>
</compile_context>

<pallas_src>
import functools

import jax
import jax.numpy as jnp
from jax.experimental import pallas as pl
from jax.experimental.pallas import tpu as pltpu


def _gfilter_layer_t(st_ref, y_all, h_t, *, num_taps, fin, batch):
    """One graph-filter layer in transposed, batch-row-stacked layout.

    st_ref : Ref (Kmax, N, N) with st_ref[k] == (S^k)^T
    y_all  : (batch*fin, N) value; row b*fin + f is feature f of batch element b
             (transposed signal: features on sublanes, nodes on lanes)
    h_t    : (fout, num_taps*fin) with h_t[o, k*fin + f] == H[k, f, o]
    returns: (batch*fout, N)
    """
    # All taps for ALL batch elements at once: one (B*Fin, N) @ (N, N) matmul per tap.
    # No serial S-power recursion in-kernel (powers precomputed once in the wrapper),
    # no block-diagonal batch expansion.
    taps = [y_all]
    for k in range(1, num_taps):
        taps.append(jnp.dot(y_all, st_ref[k], preferred_element_type=jnp.float32))

    outs = []
    for b in range(batch):                      # B == 2: tiny static loop, no grid
        if num_taps > 1:
            # Sublane-stack this batch element's taps: rows ordered (k, fin).  Fin is
            # 8-aligned for the hidden layers, so this is a cheap sublane concat
            # (no cross-lane shuffles, unlike the old lane-axis concatenation).
            z_b = jnp.concatenate(
                [t[b * fin:(b + 1) * fin, :] for t in taps], axis=0)   # (K*Fin, N)
        else:
            z_b = taps[0][b * fin:(b + 1) * fin, :]
        # One fat matmul per batch element: (Fout, K*Fin) @ (K*Fin, N).
        outs.append(jnp.dot(h_t, z_b, preferred_element_type=jnp.float32))  # (Fout, N)
    return jnp.concatenate(outs, axis=0) if batch > 1 else outs[0]   # (B*Fout, N)


def gnn_kernel(st_ref, x_ref, h1_ref, h2_ref, h3_ref, o_ref, *, batch, dims):
    (K1, F0, F1), (K2, _, F2), (K3, _, F3) = dims
    # x is (B, N) which, since F0 == 1, is already the transposed (B*F0, N) signal.
    y = x_ref[...]
    y = jnp.maximum(
        _gfilter_layer_t(st_ref, y, h1_ref[...], num_taps=K1, fin=F0, batch=batch), 0.0)
    y = jnp.maximum(
        _gfilter_layer_t(st_ref, y, h2_ref[...], num_taps=K2, fin=F1, batch=batch), 0.0)
    y = jnp.maximum(
        _gfilter_layer_t(st_ref, y, h3_ref[...], num_taps=K3, fin=F2, batch=batch), 0.0)
    o_ref[...] = y.astype(o_ref.dtype)          # (B*F3, N) == (B, N) since F3 == 1


def prepare_gnn_params(S, H1, H2, H3):
    """Parameter-only preprocessing.  Run ONCE per (S, H1, H2, H3), not per forward.

    Returns:
      st_pow : (Kmax, N, N) float32, st_pow[k] == (S^k)^T
      h*_t   : (Fout, K*Fin) float32, h_t[o, k*Fin + f] == H[k, f, o]
    """
    f32 = jnp.float32
    N = S.shape[0]
    K1, F0, F1 = H1.shape
    K2, _, F2 = H2.shape
    K3, _, F3 = H3.shape
    Kmax = max(K1, K2, K3)

    St = jnp.asarray(S, f32).T
    powers = [jnp.eye(N, dtype=f32)]
    for _ in range(Kmax - 1):
        powers.append(powers[-1] @ St)          # (S^T)^k == (S^k)^T
    st_pow = jnp.stack(powers)                  # (Kmax, N, N)

    h1_t = jnp.transpose(jnp.asarray(H1, f32), (2, 0, 1)).reshape(F1, K1 * F0)
    h2_t = jnp.transpose(jnp.asarray(H2, f32), (2, 0, 1)).reshape(F2, K2 * F1)
    h3_t = jnp.transpose(jnp.asarray(H3, f32), (2, 0, 1)).reshape(F3, K3 * F2)
    return st_pow, h1_t, h2_t, h3_t


@jax.jit
def gnn_forward(x, st_pow, h1_t, h2_t, h3_t):
    B, N = x.shape
    F0 = 1                                       # module reshapes x to (B, N, 1)
    F1, F2, F3 = h1_t.shape[0], h2_t.shape[0], h3_t.shape[0]
    K1 = h1_t.shape[1] // F0
    K2 = h2_t.shape[1] // F1
    K3 = h3_t.shape[1] // F2
    assert F3 == 1, "final GFilter must have Fout == 1 to return a (B, N) signal"
    dims = ((K1, F0, F1), (K2, F1, F2), (K3, F2, F3))
    f32 = jnp.float32

    kernel = functools.partial(gnn_kernel, batch=B, dims=dims)
    vmem_spec = pl.BlockSpec(memory_space=pltpu.MemorySpace.VMEM)

    # Declare a VMEM budget explicitly so growing N hits a clear limit instead of a
    # silent OOM-at-default-scoped-limit (16 MiB v5e / 32 MiB v6e-v7x).
    in_bytes = sum(int(a.size) * a.dtype.itemsize
                   for a in (st_pow, x, h1_t, h2_t, h3_t)) + B * N * 4
    vmem_limit = int(min(64 << 20, max(32 << 20, 4 * in_bytes)))

    out = pl.pallas_call(
        kernel,
        out_shape=jax.ShapeDtypeStruct((B * F3, N), f32),
        in_specs=[vmem_spec] * 5,                # everything resident, single step
        out_specs=vmem_spec,
        compiler_params=pltpu.CompilerParams(vmem_limit_bytes=vmem_limit),
    )(st_pow.astype(f32), x.astype(f32), h1_t.astype(f32),
      h2_t.astype(f32), h3_t.astype(f32))
    return out                                   # (B, N)


def gnn_reference(x, S, H1, H2, H3):
    """Pure-JAX reference mirroring GFilter_func / GNN.forward."""
    def gfilter(S, x, H):
        res = 0.0
        Sk = jnp.eye(S.shape[0], dtype=S.dtype)
        for k in range(H.shape[0]):
            res = res + jnp.einsum('ij,bjp,pq->biq', Sk, x, H[k])
            Sk = Sk @ S
        return res

    y = x[..., None]
    y = jax.nn.relu(gfilter(S, y, H1))
    y = jax.nn.relu(gfilter(S, y, H2))
    y = jax.nn.relu(gfilter(S, y, H3))
    return y[..., 0]


def make_normalized_laplacian(key, N):
    """Deterministic symmetric-normalized Laplacian S = I - D^-1/2 A D^-1/2."""
    r = jax.random.uniform(key, (N, N))
    A = (r + r.T) > 1.0                          # symmetric random edges
    ring = jnp.eye(N, k=1) + jnp.eye(N, k=-1) + jnp.eye(N, k=N - 1) + jnp.eye(N, k=-(N - 1))
    A = jnp.maximum(A.astype(jnp.float32), ring.astype(jnp.float32))
    A = A * (1.0 - jnp.eye(N))                   # no self-loops
    deg = A.sum(axis=1)
    d_inv_sqrt = deg ** -0.5
    S = jnp.eye(N) - (d_inv_sqrt[:, None] * A * d_inv_sqrt[None, :])
    return S.astype(jnp.float32)


if __name__ == "__main__":
    # Small shapes consistent with the module: F = [1, 32, 32, 1], Klist = [8, 8, 8]
    B, N = 2, 16
    Klist = (8, 8, 8)
    Fdims = (1, 32, 32, 1)

    key = jax.random.PRNGKey(0)
    k_s, k_x, k_h1, k_h2, k_h3 = jax.random.split(key, 5)

    S = make_normalized_laplacian(k_s, N)
    x = jax.random.normal(k_x, (B, N), dtype=jnp.float32)
    H1 = jax.random.normal(k_h1, (Klist[0], Fdims[0], Fdims[1]), dtype=jnp.float32)
    H2 = jax.random.normal(k_h2, (Klist[1], Fdims[1], Fdims[2]), dtype=jnp.float32)
    H3 = jax.random.normal(k_h3, (Klist[2], Fdims[2], Fdims[3]), dtype=jnp.float32)

    # Parameter-only preprocessing: done once, outside the per-call forward path.
    params = prepare_gnn_params(S, H1, H2, H3)

    out = gnn_forward(x, *params)
    out = jax.block_until_ready(out)

    ref = gnn_reference(x, S, H1, H2, H3)
    assert out.shape == (B, N), out.shape
    assert jnp.allclose(out, ref, atol=1e-3, rtol=1e-3), (
        f"max abs err {jnp.max(jnp.abs(out - ref))}")

    print("KERNEL_OK")
</pallas_src>

<mosaic_0001>
module attributes {stable_mosaic.version = 11 : i64} {
  func.func @gnn_kernel(%arg0: memref<8x16x16xf32, #tpu.memory_space<vmem>>, %arg1: memref<2x16xf32, #tpu.memory_space<vmem>>, %arg2: memref<32x8xf32, #tpu.memory_space<vmem>>, %arg3: memref<32x256xf32, #tpu.memory_space<vmem>>, %arg4: memref<1x256xf32, #tpu.memory_space<vmem>>, %arg5: memref<2x16xf32, #tpu.memory_space<vmem>>) attributes {dimension_semantics = [], scalar_prefetch = 0 : i64, scratch_operands = 0 : i64, tpu.core_type = #tpu.core_type<tc>} {
    %c0 = arith.constant 0 : index
    %c0_0 = arith.constant 0 : index
    %0 = vector.load %arg1[%c0, %c0_0] : memref<2x16xf32, #tpu.memory_space<vmem>>, vector<2x16xf32>
    %c0_1 = arith.constant 0 : index
    %c0_2 = arith.constant 0 : index
    %1 = vector.load %arg2[%c0_1, %c0_2] : memref<32x8xf32, #tpu.memory_space<vmem>>, vector<32x8xf32>
    %c1 = arith.constant 1 : index
    %c0_3 = arith.constant 0 : index
    %c0_4 = arith.constant 0 : index
    %2 = vector.load %arg0[%c1, %c0_3, %c0_4] : memref<8x16x16xf32, #tpu.memory_space<vmem>>, vector<1x16x16xf32>
    %3 = vector.shape_cast %2 : vector<1x16x16xf32> to vector<16x16xf32>
    %cst = arith.constant dense<0.000000e+00> : vector<2x16xf32>
    %4 = tpu.matmul %0, %3, %cst {dimension_numbers = #tpu.dot_dimension_numbers<[1], [0], [0], [1], [0, 0, 1, 1], [], []>} : vector<2x16xf32>, vector<16x16xf32>, vector<2x16xf32> -> vector<2x16xf32>
    %c2 = arith.constant 2 : index
    %c0_5 = arith.constant 0 : index
    %c0_6 = arith.constant 0 : index
    %5 = vector.load %arg0[%c2, %c0_5, %c0_6] : memref<8x16x16xf32, #tpu.memory_space<vmem>>, vector<1x16x16xf32>
    %6 = vector.shape_cast %5 : vector<1x16x16xf32> to vector<16x16xf32>
    %cst_7 = arith.constant dense<0.000000e+00> : vector<2x16xf32>
    %7 = tpu.matmul %0, %6, %cst_7 {dimension_numbers = #tpu.dot_dimension_numbers<[1], [0], [0], [1], [0, 0, 1, 1], [], []>} : vector<2x16xf32>, vector<16x16xf32>, vector<2x16xf32> -> vector<2x16xf32>
    %c3 = arith.constant 3 : index
    %c0_8 = arith.constant 0 : index
    %c0_9 = arith.constant 0 : index
    %8 = vector.load %arg0[%c3, %c0_8, %c0_9] : memref<8x16x16xf32, #tpu.memory_space<vmem>>, vector<1x16x16xf32>
    %9 = vector.shape_cast %8 : vector<1x16x16xf32> to vector<16x16xf32>
    %cst_10 = arith.constant dense<0.000000e+00> : vector<2x16xf32>
    %10 = tpu.matmul %0, %9, %cst_10 {dimension_numbers = #tpu.dot_dimension_numbers<[1], [0], [0], [1], [0, 0, 1, 1], [], []>} : vector<2x16xf32>, vector<16x16xf32>, vector<2x16xf32> -> vector<2x16xf32>
    %c4 = arith.constant 4 : index
    %c0_11 = arith.constant 0 : index
    %c0_12 = arith.constant 0 : index
    %11 = vector.load %arg0[%c4, %c0_11, %c0_12] : memref<8x16x16xf32, #tpu.memory_space<vmem>>, vector<1x16x16xf32>
    %12 = vector.shape_cast %11 : vector<1x16x16xf32> to vector<16x16xf32>
    %cst_13 = arith.constant dense<0.000000e+00> : vector<2x16xf32>
    %13 = tpu.matmul %0, %12, %cst_13 {dimension_numbers = #tpu.dot_dimension_numbers<[1], [0], [0], [1], [0, 0, 1, 1], [], []>} : vector<2x16xf32>, vector<16x16xf32>, vector<2x16xf32> -> vector<2x16xf32>
    %c5 = arith.constant 5 : index
    %c0_14 = arith.constant 0 : index
    %c0_15 = arith.constant 0 : index
    %14 = vector.load %arg0[%c5, %c0_14, %c0_15] : memref<8x16x16xf32, #tpu.memory_space<vmem>>, vector<1x16x16xf32>
    %15 = vector.shape_cast %14 : vector<1x16x16xf32> to vector<16x16xf32>
    %cst_16 = arith.constant dense<0.000000e+00> : vector<2x16xf32>
    %16 = tpu.matmul %0, %15, %cst_16 {dimension_numbers = #tpu.dot_dimension_numbers<[1], [0], [0], [1], [0, 0, 1, 1], [], []>} : vector<2x16xf32>, vector<16x16xf32>, vector<2x16xf32> -> vector<2x16xf32>
    %c6 = arith.constant 6 : index
    %c0_17 = arith.constant 0 : index
    %c0_18 = arith.constant 0 : index
    %17 = vector.load %arg0[%c6, %c0_17, %c0_18] : memref<8x16x16xf32, #tpu.memory_space<vmem>>, vector<1x16x16xf32>
    %18 = vector.shape_cast %17 : vector<1x16x16xf32> to vector<16x16xf32>
    %cst_19 = arith.constant dense<0.000000e+00> : vector<2x16xf32>
    %19 = tpu.matmul %0, %18, %cst_19 {dimension_numbers = #tpu.dot_dimension_numbers<[1], [0], [0], [1], [0, 0, 1, 1], [], []>} : vector<2x16xf32>, vector<16x16xf32>, vector<2x16xf32> -> vector<2x16xf32>
    %c7 = arith.constant 7 : index
    %c0_20 = arith.constant 0 : index
    %c0_21 = arith.constant 0 : index
    %20 = vector.load %arg0[%c7, %c0_20, %c0_21] : memref<8x16x16xf32, #tpu.memory_space<vmem>>, vector<1x16x16xf32>
    %21 = vector.shape_cast %20 : vector<1x16x16xf32> to vector<16x16xf32>
    %cst_22 = arith.constant dense<0.000000e+00> : vector<2x16xf32>
    %22 = tpu.matmul %0, %21, %cst_22 {dimension_numbers = #tpu.dot_dimension_numbers<[1], [0], [0], [1], [0, 0, 1, 1], [], []>} : vector<2x16xf32>, vector<16x16xf32>, vector<2x16xf32> -> vector<2x16xf32>
    %23 = vector.extract_strided_slice %0 {offsets = [0, 0], sizes = [1, 16], strides = [1, 1]} : vector<2x16xf32> to vector<1x16xf32>
    %24 = vector.extract_strided_slice %4 {offsets = [0, 0], sizes = [1, 16], strides = [1, 1]} : vector<2x16xf32> to vector<1x16xf32>
    %25 = vector.extract_strided_slice %7 {offsets = [0, 0], sizes = [1, 16], strides = [1, 1]} : vector<2x16xf32> to vector<1x16xf32>
    %26 = vector.extract_strided_slice %10 {offsets = [0, 0], sizes = [1, 16], strides = [1, 1]} : vector<2x16xf32> to vector<1x16xf32>
    %27 = vector.extract_strided_slice %13 {offsets = [0, 0], sizes = [1, 16], strides = [1, 1]} : vector<2x16xf32> to vector<1x16xf32>
    %28 = vector.extract_strided_slice %16 {offsets = [0, 0], sizes = [1, 16], strides = [1, 1]} : vector<2x16xf32> to vector<1x16xf32>
    %29 = vector.extract_strided_slice %19 {offsets = [0, 0], sizes = [1, 16], strides = [1, 1]} : vector<2x16xf32> to vector<1x16xf32>
    %30 = vector.extract_strided_slice %22 {offsets = [0, 0], sizes = [1, 16], strides = [1, 1]} : vector<2x16xf32> to vector<1x16xf32>
    %31 = tpu.concatenate %23, %24, %25, %26, %27, %28, %29, %30 in 0 : vector<1x16xf32>, vector<1x16xf32>, vector<1x16xf32>, vector<1x16xf32>, vector<1x16xf32>, vector<1x16xf32>, vector<1x16xf32>, vector<1x16xf32> -> vector<8x16xf32>
    %cst_23 = arith.constant dense<0.000000e+00> : vector<32x16xf32>
    %32 = tpu.matmul %1, %31, %cst_23 {dimension_numbers = #tpu.dot_dimension_numbers<[1], [0], [0], [1], [0, 0, 1, 1], [], []>} : vector<32x8xf32>, vector<8x16xf32>, vector<32x16xf32> -> vector<32x16xf32>
    %33 = vector.extract_strided_slice %0 {offsets = [1, 0], sizes = [1, 16], strides = [1, 1]} : vector<2x16xf32> to vector<1x16xf32>
    %34 = vector.extract_strided_slice %4 {offsets = [1, 0], sizes = [1, 16], strides = [1, 1]} : vector<2x16xf32> to vector<1x16xf32>
    %35 = vector.extract_strided_slice %7 {offsets = [1, 0], sizes = [1, 16], strides = [1, 1]} : vector<2x16xf32> to vector<1x16xf32>
    %36 = vector.extract_strided_slice %10 {offsets = [1, 0], sizes = [1, 16], strides = [1, 1]} : vector<2x16xf32> to vector<1x16xf32>
    %37 = vector.extract_strided_slice %13 {offsets = [1, 0], sizes = [1, 16], strides = [1, 1]} : vector<2x16xf32> to vector<1x16xf32>
    %38 = vector.extract_strided_slice %16 {offsets = [1, 0], sizes = [1, 16], strides = [1, 1]} : vector<2x16xf32> to vector<1x16xf32>
    %39 = vector.extract_strided_slice %19 {offsets = [1, 0], sizes = [1, 16], strides = [1, 1]} : vector<2x16xf32> to vector<1x16xf32>
    %40 = vector.extract_strided_slice %22 {offsets = [1, 0], sizes = [1, 16], strides = [1, 1]} : vector<2x16xf32> to vector<1x16xf32>
    %41 = tpu.concatenate %33, %34, %35, %36, %37, %38, %39, %40 in 0 : vector<1x16xf32>, vector<1x16xf32>, vector<1x16xf32>, vector<1x16xf32>, vector<1x16xf32>, vector<1x16xf32>, vector<1x16xf32>, vector<1x16xf32> -> vector<8x16xf32>
    %cst_24 = arith.constant dense<0.000000e+00> : vector<32x16xf32>
    %42 = tpu.matmul %1, %41, %cst_24 {dimension_numbers = #tpu.dot_dimension_numbers<[1], [0], [0], [1], [0, 0, 1, 1], [], []>} : vector<32x8xf32>, vector<8x16xf32>, vector<32x16xf32> -> vector<32x16xf32>
    %43 = tpu.concatenate %32, %42 in 0 : vector<32x16xf32>, vector<32x16xf32> -> vector<64x16xf32>
    %cst_25 = arith.constant 0.000000e+00 : f32
    %44 = vector.broadcast %cst_25 : f32 to vector<64x16xf32>
    %45 = arith.maximumf %43, %44 : vector<64x16xf32>
    %c0_26 = arith.constant 0 : index
    %c0_27 = arith.constant 0 : index
    %46 = vector.load %arg3[%c0_26, %c0_27] : memref<32x256xf32, #tpu.memory_space<vmem>>, vector<32x256xf32>
    %c1_28 = arith.constant 1 : index
    %c0_29 = arith.constant 0 : index
    %c0_30 = arith.constant 0 : index
    %47 = vector.load %arg0[%c1_28, %c0_29, %c0_30] : memref<8x16x16xf32, #tpu.memory_space<vmem>>, vector<1x16x16xf32>
    %48 = vector.shape_cast %47 : vector<1x16x16xf32> to vector<16x16xf32>
    %cst_31 = arith.constant dense<0.000000e+00> : vector<64x16xf32>
    %49 = tpu.matmul %45, %48, %cst_31 {dimension_numbers = #tpu.dot_dimension_numbers<[1], [0], [0], [1], [0, 0, 1, 1], [], []>} : vector<64x16xf32>, vector<16x16xf32>, vector<64x16xf32> -> vector<64x16xf32>
    %c2_32 = arith.constant 2 : index
    %c0_33 = arith.constant 0 : index
    %c0_34 = arith.constant 0 : index
    %50 = vector.load %arg0[%c2_32, %c0_33, %c0_34] : memref<8x16x16xf32, #tpu.memory_space<vmem>>, vector<1x16x16xf32>
    %51 = vector.shape_cast %50 : vector<1x16x16xf32> to vector<16x16xf32>
    %cst_35 = arith.constant dense<0.000000e+00> : vector<64x16xf32>
    %52 = tpu.matmul %45, %51, %cst_35 {dimension_numbers = #tpu.dot_dimension_numbers<[1], [0], [0], [1], [0, 0, 1, 1], [], []>} : vector<64x16xf32>, vector<16x16xf32>, vector<64x16xf32> -> vector<64x16xf32>
    %c3_36 = arith.constant 3 : index
    %c0_37 = arith.constant 0 : index
    %c0_38 = arith.constant 0 : index
    %53 = vector.load %arg0[%c3_36, %c0_37, %c0_38] : memref<8x16x16xf32, #tpu.memory_space<vmem>>, vector<1x16x16xf32>
    %54 = vector.shape_cast %53 : vector<1x16x16xf32> to vector<16x16xf32>
    %cst_39 = arith.constant dense<0.000000e+00> : vector<64x16xf32>
    %55 = tpu.matmul %45, %54, %cst_39 {dimension_numbers = #tpu.dot_dimension_numbers<[1], [0], [0], [1], [0, 0, 1, 1], [], []>} : vector<64x16xf32>, vector<16x16xf32>, vector<64x16xf32> -> vector<64x16xf32>
    %c4_40 = arith.constant 4 : index
    %c0_41 = arith.constant 0 : index
    %c0_42 = arith.constant 0 : index
    %56 = vector.load %arg0[%c4_40, %c0_41, %c0_42] : memref<8x16x16xf32, #tpu.memory_space<vmem>>, vector<1x16x16xf32>
    %57 = vector.shape_cast %56 : vector<1x16x16xf32> to vector<16x16xf32>
    %cst_43 = arith.constant dense<0.000000e+00> : vector<64x16xf32>
    %58 = tpu.matmul %45, %57, %cst_43 {dimension_numbers = #tpu.dot_dimension_numbers<[1], [0], [0], [1], [0, 0, 1, 1], [], []>} : vector<64x16xf32>, vector<16x16xf32>, vector<64x16xf32> -> vector<64x16xf32>
    %c5_44 = arith.constant 5 : index
    %c0_45 = arith.constant 0 : index
    %c0_46 = arith.constant 0 : index
    %59 = vector.load %arg0[%c5_44, %c0_45, %c0_46] : memref<8x16x16xf32, #tpu.memory_space<vmem>>, vector<1x16x16xf32>
    %60 = vector.shape_cast %59 : vector<1x16x16xf32> to vector<16x16xf32>
    %cst_47 = arith.constant dense<0.000000e+00> : vector<64x16xf32>
    %61 = tpu.matmul %45, %60, %cst_47 {dimension_numbers = #tpu.dot_dimension_numbers<[1], [0], [0], [1], [0, 0, 1, 1], [], []>} : vector<64x16xf32>, vector<16x16xf32>, vector<64x16xf32> -> vector<64x16xf32>
    %c6_48 = arith.constant 6 : index
    %c0_49 = arith.constant 0 : index
    %c0_50 = arith.constant 0 : index
    %62 = vector.load %arg0[%c6_48, %c0_49, %c0_50] : memref<8x16x16xf32, #tpu.memory_space<vmem>>, vector<1x16x16xf32>
    %63 = vector.shape_cast %62 : vector<1x16x16xf32> to vector<16x16xf32>
    %cst_51 = arith.constant dense<0.000000e+00> : vector<64x16xf32>
    %64 = tpu.matmul %45, %63, %cst_51 {dimension_numbers = #tpu.dot_dimension_numbers<[1], [0], [0], [1], [0, 0, 1, 1], [], []>} : vector<64x16xf32>, vector<16x16xf32>, vector<64x16xf32> -> vector<64x16xf32>
    %c7_52 = arith.constant 7 : index
    %c0_53 = arith.constant 0 : index
    %c0_54 = arith.constant 0 : index
    %65 = vector.load %arg0[%c7_52, %c0_53, %c0_54] : memref<8x16x16xf32, #tpu.memory_space<vmem>>, vector<1x16x16xf32>
    %66 = vector.shape_cast %65 : vector<1x16x16xf32> to vector<16x16xf32>
    %cst_55 = arith.constant dense<0.000000e+00> : vector<64x16xf32>
    %67 = tpu.matmul %45, %66, %cst_55 {dimension_numbers = #tpu.dot_dimension_numbers<[1], [0], [0], [1], [0, 0, 1, 1], [], []>} : vector<64x16xf32>, vector<16x16xf32>, vector<64x16xf32> -> vector<64x16xf32>
    %68 = vector.extract_strided_slice %45 {offsets = [0, 0], sizes = [32, 16], strides = [1, 1]} : vector<64x16xf32> to vector<32x16xf32>
    %69 = vector.extract_strided_slice %49 {offsets = [0, 0], sizes = [32, 16], strides = [1, 1]} : vector<64x16xf32> to vector<32x16xf32>
    %70 = vector.extract_strided_slice %52 {offsets = [0, 0], sizes = [32, 16], strides = [1, 1]} : vector<64x16xf32> to vector<32x16xf32>
    %71 = vector.extract_strided_slice %55 {offsets = [0, 0], sizes = [32, 16], strides = [1, 1]} : vector<64x16xf32> to vector<32x16xf32>
    %72 = vector.extract_strided_slice %58 {offsets = [0, 0], sizes = [32, 16], strides = [1, 1]} : vector<64x16xf32> to vector<32x16xf32>
    %73 = vector.extract_strided_slice %61 {offsets = [0, 0], sizes = [32, 16], strides = [1, 1]} : vector<64x16xf32> to vector<32x16xf32>
    %74 = vector.extract_strided_slice %64 {offsets = [0, 0], sizes = [32, 16], strides = [1, 1]} : vector<64x16xf32> to vector<32x16xf32>
    %75 = vector.extract_strided_slice %67 {offsets = [0, 0], sizes = [32, 16], strides = [1, 1]} : vector<64x16xf32> to vector<32x16xf32>
    %76 = tpu.concatenate %68, %69, %70, %71, %72, %73, %74, %75 in 0 : vector<32x16xf32>, vector<32x16xf32>, vector<32x16xf32>, vector<32x16xf32>, vector<32x16xf32>, vector<32x16xf32>, vector<32x16xf32>, vector<32x16xf32> -> vector<256x16xf32>
    %cst_56 = arith.constant dense<0.000000e+00> : vector<32x16xf32>
    %77 = tpu.matmul %46, %76, %cst_56 {dimension_numbers = #tpu.dot_dimension_numbers<[1], [0], [0], [1], [0, 0, 1, 1], [], []>} : vector<32x256xf32>, vector<256x16xf32>, vector<32x16xf32> -> vector<32x16xf32>
    %78 = vector.extract_strided_slice %45 {offsets = [32, 0], sizes = [32, 16], strides = [1, 1]} : vector<64x16xf32> to vector<32x16xf32>
    %79 = vector.extract_strided_slice %49 {offsets = [32, 0], sizes = [32, 16], strides = [1, 1]} : vector<64x16xf32> to vector<32x16xf32>
    %80 = vector.extract_strided_slice %52 {offsets = [32, 0], sizes = [32, 16], strides = [1, 1]} : vector<64x16xf32> to vector<32x16xf32>
    %81 = vector.extract_strided_slice %55 {offsets = [32, 0], sizes = [32, 16], strides = [1, 1]} : vector<64x16xf32> to vector<32x16xf32>
    %82 = vector.extract_strided_slice %58 {offsets = [32, 0], sizes = [32, 16], strides = [1, 1]} : vector<64x16xf32> to vector<32x16xf32>
    %83 = vector.extract_strided_slice %61 {offsets = [32, 0], sizes = [32, 16], strides = [1, 1]} : vector<64x16xf32> to vector<32x16xf32>
    %84 = vector.extract_strided_slice %64 {offsets = [32, 0], sizes = [32, 16], strides = [1, 1]} : vector<64x16xf32> to vector<32x16xf32>
    %85 = vector.extract_strided_slice %67 {offsets = [32, 0], sizes = [32, 16], strides = [1, 1]} : vector<64x16xf32> to vector<32x16xf32>
    %86 = tpu.concatenate %78, %79, %80, %81, %82, %83, %84, %85 in 0 : vector<32x16xf32>, vector<32x16xf32>, vector<32x16xf32>, vector<32x16xf32>, vector<32x16xf32>, vector<32x16xf32>, vector<32x16xf32>, vector<32x16xf32> -> vector<256x16xf32>
    %cst_57 = arith.constant dense<0.000000e+00> : vector<32x16xf32>
    %87 = tpu.matmul %46, %86, %cst_57 {dimension_numbers = #tpu.dot_dimension_numbers<[1], [0], [0], [1], [0, 0, 1, 1], [], []>} : vector<32x256xf32>, vector<256x16xf32>, vector<32x16xf32> -> vector<32x16xf32>
    %88 = tpu.concatenate %77, %87 in 0 : vector<32x16xf32>, vector<32x16xf32> -> vector<64x16xf32>
    %cst_58 = arith.constant 0.000000e+00 : f32
    %89 = vector.broadcast %cst_58 : f32 to vector<64x16xf32>
    %90 = arith.maximumf %88, %89 : vector<64x16xf32>
    %c0_59 = arith.constant 0 : index
    %c0_60 = arith.constant 0 : index
    %91 = vector.load %arg4[%c0_59, %c0_60] : memref<1x256xf32, #tpu.memory_space<vmem>>, vector<1x256xf32>
    %c1_61 = arith.constant 1 : index
    %c0_62 = arith.constant 0 : index
    %c0_63 = arith.constant 0 : index
    %92 = vector.load %arg0[%c1_61, %c0_62, %c0_63] : memref<8x16x16xf32, #tpu.memory_space<vmem>>, vector<1x16x16xf32>
    %93 = vector.shape_cast %92 : vector<1x16x16xf32> to vector<16x16xf32>
    %cst_64 = arith.constant dense<0.000000e+00> : vector<64x16xf32>
    %94 = tpu.matmul %90, %93, %cst_64 {dimension_numbers = #tpu.dot_dimension_numbers<[1], [0], [0], [1], [0, 0, 1, 1], [], []>} : vector<64x16xf32>, vector<16x16xf32>, vector<64x16xf32> -> vector<64x16xf32>
    %c2_65 = arith.constant 2 : index
    %c0_66 = arith.constant 0 : index
    %c0_67 = arith.constant 0 : index
    %95 = vector.load %arg0[%c2_65, %c0_66, %c0_67] : memref<8x16x16xf32, #tpu.memory_space<vmem>>, vector<1x16x16xf32>
    %96 = vector.shape_cast %95 : vector<1x16x16xf32> to vector<16x16xf32>
    %cst_68 = arith.constant dense<0.000000e+00> : vector<64x16xf32>
    %97 = tpu.matmul %90, %96, %cst_68 {dimension_numbers = #tpu.dot_dimension_numbers<[1], [0], [0], [1], [0, 0, 1, 1], [], []>} : vector<64x16xf32>, vector<16x16xf32>, vector<64x16xf32> -> vector<64x16xf32>
    %c3_69 = arith.constant 3 : index
    %c0_70 = arith.constant 0 : index
    %c0_71 = arith.constant 0 : index
    %98 = vector.load %arg0[%c3_69, %c0_70, %c0_71] : memref<8x16x16xf32, #tpu.memory_space<vmem>>, vector<1x16x16xf32>
    %99 = vector.shape_cast %98 : vector<1x16x16xf32> to vector<16x16xf32>
    %cst_72 = arith.constant dense<0.000000e+00> : vector<64x16xf32>
    %100 = tpu.matmul %90, %99, %cst_72 {dimension_numbers = #tpu.dot_dimension_numbers<[1], [0], [0], [1], [0, 0, 1, 1], [], []>} : vector<64x16xf32>, vector<16x16xf32>, vector<64x16xf32> -> vector<64x16xf32>
    %c4_73 = arith.constant 4 : index
    %c0_74 = arith.constant 0 : index
    %c0_75 = arith.constant 0 : index
    %101 = vector.load %arg0[%c4_73, %c0_74, %c0_75] : memref<8x16x16xf32, #tpu.memory_space<vmem>>, vector<1x16x16xf32>
    %102 = vector.shape_cast %101 : vector<1x16x16xf32> to vector<16x16xf32>
    %cst_76 = arith.constant dense<0.000000e+00> : vector<64x16xf32>
    %103 = tpu.matmul %90, %102, %cst_76 {dimension_numbers = #tpu.dot_dimension_numbers<[1], [0], [0], [1], [0, 0, 1, 1], [], []>} : vector<64x16xf32>, vector<16x16xf32>, vector<64x16xf32> -> vector<64x16xf32>
    %c5_77 = arith.constant 5 : index
    %c0_78 = arith.constant 0 : index
    %c0_79 = arith.constant 0 : index
    %104 = vector.load %arg0[%c5_77, %c0_78, %c0_79] : memref<8x16x16xf32, #tpu.memory_space<vmem>>, vector<1x16x16xf32>
    %105 = vector.shape_cast %104 : vector<1x16x16xf32> to vector<16x16xf32>
    %cst_80 = arith.constant dense<0.000000e+00> : vector<64x16xf32>
    %106 = tpu.matmul %90, %105, %cst_80 {dimension_numbers = #tpu.dot_dimension_numbers<[1], [0], [0], [1], [0, 0, 1, 1], [], []>} : vector<64x16xf32>, vector<16x16xf32>, vector<64x16xf32> -> vector<64x16xf32>
    %c6_81 = arith.constant 6 : index
    %c0_82 = arith.constant 0 : index
    %c0_83 = arith.constant 0 : index
    %107 = vector.load %arg0[%c6_81, %c0_82, %c0_83] : memref<8x16x16xf32, #tpu.memory_space<vmem>>, vector<1x16x16xf32>
    %108 = vector.shape_cast %107 : vector<1x16x16xf32> to vector<16x16xf32>
    %cst_84 = arith.constant dense<0.000000e+00> : vector<64x16xf32>
    %109 = tpu.matmul %90, %108, %cst_84 {dimension_numbers = #tpu.dot_dimension_numbers<[1], [0], [0], [1], [0, 0, 1, 1], [], []>} : vector<64x16xf32>, vector<16x16xf32>, vector<64x16xf32> -> vector<64x16xf32>
    %c7_85 = arith.constant 7 : index
    %c0_86 = arith.constant 0 : index
    %c0_87 = arith.constant 0 : index
    %110 = vector.load %arg0[%c7_85, %c0_86, %c0_87] : memref<8x16x16xf32, #tpu.memory_space<vmem>>, vector<1x16x16xf32>
    %111 = vector.shape_cast %110 : vector<1x16x16xf32> to vector<16x16xf32>
    %cst_88 = arith.constant dense<0.000000e+00> : vector<64x16xf32>
    %112 = tpu.matmul %90, %111, %cst_88 {dimension_numbers = #tpu.dot_dimension_numbers<[1], [0], [0], [1], [0, 0, 1, 1], [], []>} : vector<64x16xf32>, vector<16x16xf32>, vector<64x16xf32> -> vector<64x16xf32>
    %113 = vector.extract_strided_slice %90 {offsets = [0, 0], sizes = [32, 16], strides = [1, 1]} : vector<64x16xf32> to vector<32x16xf32>
    %114 = vector.extract_strided_slice %94 {offsets = [0, 0], sizes = [32, 16], strides = [1, 1]} : vector<64x16xf32> to vector<32x16xf32>
    %115 = vector.extract_strided_slice %97 {offsets = [0, 0], sizes = [32, 16], strides = [1, 1]} : vector<64x16xf32> to vector<32x16xf32>
    %116 = vector.extract_strided_slice %100 {offsets = [0, 0], sizes = [32, 16], strides = [1, 1]} : vector<64x16xf32> to vector<32x16xf32>
    %117 = vector.extract_strided_slice %103 {offsets = [0, 0], sizes = [32, 16], strides = [1, 1]} : vector<64x16xf32> to vector<32x16xf32>
    %118 = vector.extract_strided_slice %106 {offsets = [0, 0], sizes = [32, 16], strides = [1, 1]} : vector<64x16xf32> to vector<32x16xf32>
    %119 = vector.extract_strided_slice %109 {offsets = [0, 0], sizes = [32, 16], strides = [1, 1]} : vector<64x16xf32> to vector<32x16xf32>
    %120 = vector.extract_strided_slice %112 {offsets = [0, 0], sizes = [32, 16], strides = [1, 1]} : vector<64x16xf32> to vector<32x16xf32>
    %121 = tpu.concatenate %113, %114, %115, %116, %117, %118, %119, %120 in 0 : vector<32x16xf32>, vector<32x16xf32>, vector<32x16xf32>, vector<32x16xf32>, vector<32x16xf32>, vector<32x16xf32>, vector<32x16xf32>, vector<32x16xf32> -> vector<256x16xf32>
    %cst_89 = arith.constant dense<0.000000e+00> : vector<1x16xf32>
    %122 = tpu.matmul %91, %121, %cst_89 {dimension_numbers = #tpu.dot_dimension_numbers<[1], [0], [0], [1], [0, 0, 1, 1], [], []>} : vector<1x256xf32>, vector<256x16xf32>, vector<1x16xf32> -> vector<1x16xf32>
    %123 = vector.extract_strided_slice %90 {offsets = [32, 0], sizes = [32, 16], strides = [1, 1]} : vector<64x16xf32> to vector<32x16xf32>
    %124 = vector.extract_strided_slice %94 {offsets = [32, 0], sizes = [32, 16], strides = [1, 1]} : vector<64x16xf32> to vector<32x16xf32>
    %125 = vector.extract_strided_slice %97 {offsets = [32, 0], sizes = [32, 16], strides = [1, 1]} : vector<64x16xf32> to vector<32x16xf32>
    %126 = vector.extract_strided_slice %100 {offsets = [32, 0], sizes = [32, 16], strides = [1, 1]} : vector<64x16xf32> to vector<32x16xf32>
    %127 = vector.extract_strided_slice %103 {offsets = [32, 0], sizes = [32, 16], strides = [1, 1]} : vector<64x16xf32> to vector<32x16xf32>
    %128 = vector.extract_strided_slice %106 {offsets = [32, 0], sizes = [32, 16], strides = [1, 1]} : vector<64x16xf32> to vector<32x16xf32>
    %129 = vector.extract_strided_slice %109 {offsets = [32, 0], sizes = [32, 16], strides = [1, 1]} : vector<64x16xf32> to vector<32x16xf32>
    %130 = vector.extract_strided_slice %112 {offsets = [32, 0], sizes = [32, 16], strides = [1, 1]} : vector<64x16xf32> to vector<32x16xf32>
    %131 = tpu.concatenate %123, %124, %125, %126, %127, %128, %129, %130 in 0 : vector<32x16xf32>, vector<32x16xf32>, vector<32x16xf32>, vector<32x16xf32>, vector<32x16xf32>, vector<32x16xf32>, vector<32x16xf32>, vector<32x16xf32> -> vector<256x16xf32>
    %cst_90 = arith.constant dense<0.000000e+00> : vector<1x16xf32>
    %132 = tpu.matmul %91, %131, %cst_90 {dimension_numbers = #tpu.dot_dimension_numbers<[1], [0], [0], [1], [0, 0, 1, 1], [], []>} : vector<1x256xf32>, vector<256x16xf32>, vector<1x16xf32> -> vector<1x16xf32>
    %133 = tpu.concatenate %122, %132 in 0 : vector<1x16xf32>, vector<1x16xf32> -> vector<2x16xf32>
    %cst_91 = arith.constant 0.000000e+00 : f32
    %134 = vector.broadcast %cst_91 : f32 to vector<2x16xf32>
    %135 = arith.maximumf %133, %134 : vector<2x16xf32>
    %c0_92 = arith.constant 0 : index
    %c0_93 = arith.constant 0 : index
    %136 = vector.load %arg5[%c0_92, %c0_93] : memref<2x16xf32, #tpu.memory_space<vmem>>, vector<2x16xf32>
    tpu.vector_store %arg5[%c0_92, %c0_93], %135 {strides = array<i32>} : memref<2x16xf32, #tpu.memory_space<vmem>>, vector<2x16xf32>,
    return
  }
}

</mosaic_0001>

<llo_original>
// kernel: gnn_forward.1
$region0: #{gnn_forward.1}
  #allocation0 [shape = 'u32[]', space=smem, size = 0x4, offset = 0x4, fixed_abs, tag = 'smem constant byte address 0x4 - core index']
  #allocation1 [shape = 'u32[144,128]{1,0:T(1,128)}', space=vmem, size = 0x12000, scoped, tag = 'internal scratch']
  %s0 = inlined_call_operand.hbm [shape: f32[8,16,16], index: 0, kind: input, shape index: {}]
  %s1 = inlined_call_operand.vmem [shape: f32[2,16], index: 1, kind: input, shape index: {}]
  %s2 = inlined_call_operand.vmem [shape: f32[32,8], index: 2, kind: input, shape index: {}]
  %s3 = inlined_call_operand.hbm [shape: f32[32,256], index: 3, kind: input, shape index: {}]
  %s4 = inlined_call_operand.vmem [shape: f32[1,256], index: 4, kind: input, shape index: {}]
  %s5 = inlined_call_operand.hbm [shape: f32[2,16], index: 5, kind: output, shape index: {}]
  %s6 = sld [smem:[#allocation0]]
  $region38: #{gnn_forward.1} parent=0
    _
  %s8 = ssub.s32 1, %s6
  %s9 = scalar_select 0, %s8, %s6
  $region1: #{gnn_forward.1} parent=0
    #allocation2 [shape = 'u8[65536]{0}', space=vmem, size = 0x10000, scoped, tag = 'input window, operand 0, single buffered']
    #allocation3 [shape = 's32[1]{0}', space=sflag, size = 0x4, scoped, tag = 'scoped memory for gnn_forward.1']
    #allocation4 [shape = 's32[1]{0}', space=sflag, size = 0x4, scoped, tag = 'scoped memory for gnn_forward.1']
    #allocation5 [shape = 'u8[32768]{0}', space=vmem, size = 0x8000, scoped, tag = 'input window, operand 3, single buffered']
    #allocation6 [shape = 's32[1]{0}', space=sflag, size = 0x4, scoped, tag = 'scoped memory for gnn_forward.1']
    #allocation7 [shape = 'u8[1024]{0}', space=vmem, size = 0x400, scoped, tag = 'output window, operand 0, single buffered']
    %10 = vsyncpa [#allocation3], 0
    %11 = vsyncpa [#allocation6], 0
    %12 = vsyncpa [#allocation4], 0
    // Predicated region
    $region2: #{gnn_forward.1} parent=1 // pred_check
      _
    $region3: #{gnn_forward.1} parent=1 // pred_check_branch
      %14 = sbr.rel (0) target = $region5
    $region4: #{gnn_forward.1} parent=1 // pred_region
      %s16 = ssub.s32 2048, 2048
      %17 = vsyncadd [#allocation3], %s16
      %s18 = sshll.u32 [#allocation2], 4
      %s19 = int_to_ptr.vmem [resolvable:$true] %s18
      %24 = dma.hbm_to_vmem [thread:$0]  %s0, 2048, %s19, [#allocation3], 128, 128, 8
    $region5: #{gnn_forward.1} parent=1 // pred_fallthru
      _
    // Predicated region
    $region6: #{gnn_forward.1} parent=1 // pred_check
      _
    $region7: #{gnn_forward.1} parent=1 // pred_check_branch
      %26 = sbr.rel (0) target = $region9
    $region8: #{gnn_forward.1} parent=1 // pred_region
      _
    $region9: #{gnn_forward.1} parent=1 // pred_fallthru
      _
    // Predicated region
    $region10: #{gnn_forward.1} parent=1 // pred_check
      _
    $region11: #{gnn_forward.1} parent=1 // pred_check_branch
      %28 = sbr.rel (0) target = $region13
    $region12: #{gnn_forward.1} parent=1 // pred_region
      _
    $region13: #{gnn_forward.1} parent=1 // pred_fallthru
      _
    // Predicated region
    $region14: #{gnn_forward.1} parent=1 // pred_check
      _
    $region15: #{gnn_forward.1} parent=1 // pred_check_branch
      %30 = sbr.rel (0) target = $region17
    $region16: #{gnn_forward.1} parent=1 // pred_region
      %s32 = ssub.s32 1024, 1024
      %33 = vsyncadd [#allocation6], %s32
      %s34 = sshll.u32 [#allocation5], 4
      %s35 = int_to_ptr.vmem [resolvable:$true] %s34
      %40 = dma.hbm_to_vmem [thread:$0]  %s3, 1024, %s35, [#allocation6], 256, 256, 16
    $region17: #{gnn_forward.1} parent=1 // pred_fallthru
      _
    // Predicated region
    $region18: #{gnn_forward.1} parent=1 // pred_check
      _
    $region19: #{gnn_forward.1} parent=1 // pred_check_branch
      %42 = sbr.rel (0) target = $region21
    $region20: #{gnn_forward.1} parent=1 // pred_region
      _
    $region21: #{gnn_forward.1} parent=1 // pred_fallthru
      _
    // Predicated region
    $region22: #{gnn_forward.1} parent=1 // pred_check
      _
    $region23: #{gnn_forward.1} parent=1 // pred_check_branch
      %44 = sbr.rel (0) target = $region25
    $region24: #{gnn_forward.1} parent=1 // pred_region
      %45 = dma.done [#allocation3], 2048
    $region25: #{gnn_forward.1} parent=1 // pred_fallthru
      _
    // Predicated region
    $region26: #{gnn_forward.1} parent=1 // pred_check
      _
    $region27: #{gnn_forward.1} parent=1 // pred_check_branch
      %47 = sbr.rel (0) target = $region29
    $region28: #{gnn_forward.1} parent=1 // pred_region
      %48 = dma.done [#allocation6], 1024
    $region29: #{gnn_forward.1} parent=1 // pred_fallthru
      _
    %v49 = vld [vmem:[%s1] sm:$0x3]
    %v50 = vld [vmem:[%s2] sm:$0xff]
    %v51 = vld [vmem:[%s2 + $0x8] sm:$0xff]
    %v52 = vld [vmem:[%s2 + $0x10] sm:$0xff]
    %v53 = vld [vmem:[%s2 + $0x18] sm:$0xff]
    %s54 = scalar_lea.vmem [#allocation2], 16
    %v55 = vld [vmem:[%s54] sm:$0xff]
    %v56 = vld [vmem:[%s54 + $0x8] sm:$0xff]
    %vm57 = vcmask 130048
    %v59 = vsel %vm57, %v49, 0
    %61 = vmatprep.subr.mxu0 0.0
    %62 = vmatpush1.msra.mxu0 %v55
    %63 = vmatprep.subr.mxu0 0.0
    %64 = vmatpush1.msra.mxu0 %v56
    %65 = vmatprep.subr.mxu0 0.0
    %66 = vmatpush1.msra.mxu0 0.0
    %67 = vmatprep.subr.mxu0 0.0
    %68 = vmatpush1.msra.mxu0 0.0
    %69 = vmatprep.subr.mxu0 0.0
    %70 = vmatpush1.msra.mxu0 0.0
    %71 = vmatprep.subr.mxu0 0.0
    %72 = vmatpush1.msra.mxu0 0.0
    %73 = vmatprep.subr.mxu0 0.0
    %74 = vmatpush1.msra.mxu0 0.0
    %75 = vmatprep.subr.mxu0 0.0
    %76 = vmatpush1.msra.mxu0 0.0
    %77 = vmatprep.subr.mxu0 0.0
    %78 = vmatpush1.msra.mxu0 0.0
    %79 = vmatprep.subr.mxu0 0.0
    %80 = vmatpush1.msra.mxu0 0.0
    %81 = vmatprep.subr.mxu0 0.0
    %82 = vmatpush1.msra.mxu0 0.0
    %83 = vmatprep.subr.mxu0 0.0
    %84 = vmatpush1.msra.mxu0 0.0
    %85 = vmatprep.subr.mxu0 0.0
    %86 = vmatpush1.msra.mxu0 0.0
    %87 = vmatprep.subr.mxu0 0.0
    %88 = vmatpush1.msra.mxu0 0.0
    %89 = vmatprep.subr.mxu0 0.0
    %90 = vmatpush1.msra.mxu0 0.0
    %91 = vmatprep.subr.mxu0 0.0
    %92 = vmatpush1.msra.mxu0 0.0
    %93 = vmatprep.subr.mxu0 0.0
    %94 = vmatpush1.msra.mxu0 0.0
    %95 = vmatprep.subr.mxu0 0.0
    %96 = vmatpush1.msra.mxu0 0.0
    %97 = vmatprep.subr.mxu0 0.0
    %98 = vmatpush1.msra.mxu0 0.0
    %99 = vmatprep.subr.mxu0 0.0
    %100 = vmatpush1.msra.mxu0 0.0
    %101 = vmatprep.subr.mxu0 0.0
    %102 = vmatpush1.msra.mxu0 0.0
    %103 = vmatprep.subr.mxu0 0.0
    %104 = vmatpush1.msra.mxu0 0.0
    %105 = vmatprep.subr.mxu0 0.0
    %106 = vmatpush1.msra.mxu0 0.0
    %107 = vmatprep.subr.mxu0 0.0
    %108 = vmatpush1.msra.mxu0 0.0
    %109 = vmatprep.subr.mxu0 0.0
    %110 = vmatpush1.msra.mxu0 0.0
    %111 = vmatprep.subr.mxu0 0.0
    %112 = vmatpush1.msra.mxu0 0.0
    %113 = vmatprep.subr.mxu0 0.0
    %114 = vmatpush1.msra.mxu0 0.0
    %115 = vmatprep.subr.mxu0 0.0
    %116 = vmatpush1.msra.mxu0 0.0
    %117 = vmatprep.subr.mxu0 0.0
    %118 = vmatpush1.msra.mxu0 0.0
    %119 = vmatprep.subr.mxu0 0.0
    %120 = vmatpush1.msra.mxu0 0.0
    %121 = vmatprep.subr.mxu0 0.0
    %122 = vmatpush1.msra.mxu0 0.0
    %123 = vmatprep.subr.mxu0 0.0
    %124 = vmatpush1.msra.mxu0 0.0
    %125 = vmatprep.mubr.f32.mxu0 0.0
    %126 = vmatmul.mubr.f32.gmra.mrb[0].mxu0 %v59
    %v127 = vpop.f32.mrb[0].mxu0
    %v128 = vadd.f32 0.0, %v127
    %v129 = vpop.f32.mrb[0].mxu0
    %130 = vdwg.mxu0
    %s131 = scalar_lea.vmem [#allocation2], 32
    %v132 = vld [vmem:[%s131] sm:$0xff]
    %v133 = vld [vmem:[%s131 + $0x8] sm:$0xff]
    %134 = vmatprep.subr.mxu0 0.0
    %135 = vmatpush1.msra.mxu0 %v132
    %136 = vmatprep.subr.mxu0 0.0
    %137 = vmatpush1.msra.mxu0 %v133
    %138 = vmatprep.subr.mxu0 0.0
    %139 = vmatpush1.msra.mxu0 0.0
    %140 = vmatprep.subr.mxu0 0.0
    %141 = vmatpush1.msra.mxu0 0.0
    %142 = vmatprep.subr.mxu0 0.0
    %143 = vmatpush1.msra.mxu0 0.0
    %144 = vmatprep.subr.mxu0 0.0
    %145 = vmatpush1.msra.mxu0 0.0
    %146 = vmatprep.subr.mxu0 0.0
    %147 = vmatpush1.msra.mxu0 0.0
    %148 = vmatprep.subr.mxu0 0.0
    %149 = vmatpush1.msra.mxu0 0.0
    %150 = vmatprep.subr.mxu0 0.0
    %151 = vmatpush1.msra.mxu0 0.0
    %152 = vmatprep.subr.mxu0 0.0
    %153 = vmatpush1.msra.mxu0 0.0
    %154 = vmatprep.subr.mxu0 0.0
    %155 = vmatpush1.msra.mxu0 0.0
    %156 = vmatprep.subr.mxu0 0.0
    %157 = vmatpush1.msra.mxu0 0.0
    %158 = vmatprep.subr.mxu0 0.0
    %159 = vmatpush1.msra.mxu0 0.0
    %160 = vmatprep.subr.mxu0 0.0
    %161 = vmatpush1.msra.mxu0 0.0
    %162 = vmatprep.subr.mxu0 0.0
    %163 = vmatpush1.msra.mxu0 0.0
    %164 = vmatprep.subr.mxu0 0.0
    %165 = vmatpush1.msra.mxu0 0.0
    %166 = vmatprep.subr.mxu0 0.0
    %167 = vmatpush1.msra.mxu0 0.0
    %168 = vmatprep.subr.mxu0 0.0
    %169 = vmatpush1.msra.mxu0 0.0
    %170 = vmatprep.subr.mxu0 0.0
    %171 = vmatpush1.msra.mxu0 0.0
    %172 = vmatprep.subr.mxu0 0.0
    %173 = vmatpush1.msra.mxu0 0.0
    %174 = vmatprep.subr.mxu0 0.0
    %175 = vmatpush1.msra.mxu0 0.0
    %176 = vmatprep.subr.mxu0 0.0
    %177 = vmatpush1.msra.mxu0 0.0
    %178 = vmatprep.subr.mxu0 0.0
    %179 = vmatpush1.msra.mxu0 0.0
    %180 = vmatprep.subr.mxu0 0.0
    %181 = vmatpush1.msra.mxu0 0.0
    %182 = vmatprep.subr.mxu0 0.0
    %183 = vmatpush1.msra.mxu0 0.0
    %184 = vmatprep.subr.mxu0 0.0
    %185 = vmatpush1.msra.mxu0 0.0
    %186 = vmatprep.subr.mxu0 0.0
    %187 = vmatpush1.msra.mxu0 0.0
    %188 = vmatprep.subr.mxu0 0.0
    %189 = vmatpush1.msra.mxu0 0.0
    %190 = vmatprep.subr.mxu0 0.0
    %191 = vmatpush1.msra.mxu0 0.0
    %192 = vmatprep.subr.mxu0 0.0
    %193 = vmatpush1.msra.mxu0 0.0
    %194 = vmatprep.subr.mxu0 0.0
    %195 = vmatpush1.msra.mxu0 0.0
    %196 = vmatprep.subr.mxu0 0.0
    %197 = vmatpush1.msra.mxu0 0.0
    %198 = vmatprep.mubr.f32.mxu0 0.0
    %199 = vmatmul.mubr.f32.gmra.mrb[0].mxu0 %v59
    %v200 = vpop.f32.mrb[0].mxu0
    %v201 = vadd.f32 0.0, %v200
    %v202 = vpop.f32.mrb[0].mxu0
    %203 = vdwg.mxu0
    %s204 = scalar_lea.vmem [#allocation2], 48
    %v205 = vld [vmem:[%s204] sm:$0xff]
    %v206 = vld [vmem:[%s204 + $0x8] sm:$0xff]
    %207 = vmatprep.subr.mxu0 0.0
    %208 = vmatpush1.msra.mxu0 %v205
    %209 = vmatprep.subr.mxu0 0.0
    %210 = vmatpush1.msra.mxu0 %v206
    %211 = vmatprep.subr.mxu0 0.0
    %212 = vmatpush1.msra.mxu0 0.0
    %213 = vmatprep.subr.mxu0 0.0
    %214 = vmatpush1.msra.mxu0 0.0
    %215 = vmatprep.subr.mxu0 0.0
    %216 = vmatpush1.msra.mxu0 0.0
    %217 = vmatprep.subr.mxu0 0.0
    %218 = vmatpush1.msra.mxu0 0.0
    %219 = vmatprep.subr.mxu0 0.0
    %220 = vmatpush1.msra.mxu0 0.0
    %221 = vmatprep.subr.mxu0 0.0
    %222 = vmatpush1.msra.mxu0 0.0
    %223 = vmatprep.subr.mxu0 0.0
    %224 = vmatpush1.msra.mxu0 0.0
    %225 = vmatprep.subr.mxu0 0.0
    %226 = vmatpush1.msra.mxu0 0.0
    %227 = vmatprep.subr.mxu0 0.0
    %228 = vmatpush1.msra.mxu0 0.0
    %229 = vmatprep.subr.mxu0 0.0
    %230 = vmatpush1.msra.mxu0 0.0
    %231 = vmatprep.subr.mxu0 0.0
    %232 = vmatpush1.msra.mxu0 0.0
    %233 = vmatprep.subr.mxu0 0.0
    %234 = vmatpush1.msra.mxu0 0.0
    %235 = vmatprep.subr.mxu0 0.0
    %236 = vmatpush1.msra.mxu0 0.0
    %237 = vmatprep.subr.mxu0 0.0
    %238 = vmatpush1.msra.mxu0 0.0
    %239 = vmatprep.subr.mxu0 0.0
    %240 = vmatpush1.msra.mxu0 0.0
    %241 = vmatprep.subr.mxu0 0.0
    %242 = vmatpush1.msra.mxu0 0.0
    %243 = vmatprep.subr.mxu0 0.0
    %244 = vmatpush1.msra.mxu0 0.0
    %245 = vmatprep.subr.mxu0 0.0
    %246 = vmatpush1.msra.mxu0 0.0
    %247 = vmatprep.subr.mxu0 0.0
    %248 = vmatpush1.msra.mxu0 0.0
    %249 = vmatprep.subr.mxu0 0.0
    %250 = vmatpush1.msra.mxu0 0.0
    %251 = vmatprep.subr.mxu0 0.0
    %252 = vmatpush1.msra.mxu0 0.0
    %253 = vmatprep.subr.mxu0 0.0
    %254 = vmatpush1.msra.mxu0 0.0
    %255 = vmatprep.subr.mxu0 0.0
    %256 = vmatpush1.msra.mxu0 0.0
    %257 = vmatprep.subr.mxu0 0.0
    %258 = vmatpush1.msra.mxu0 0.0
    %259 = vmatprep.subr.mxu0 0.0
    %260 = vmatpush1.msra.mxu0 0.0
    %261 = vmatprep.subr.mxu0 0.0
    %262 = vmatpush1.msra.mxu0 0.0
    %263 = vmatprep.subr.mxu0 0.0
    %264 = vmatpush1.msra.mxu0 0.0
    %265 = vmatprep.subr.mxu0 0.0
    %266 = vmatpush1.msra.mxu0 0.0
    %267 = vmatprep.subr.mxu0 0.0
    %268 = vmatpush1.msra.mxu0 0.0
    %269 = vmatprep.subr.mxu0 0.0
    %270 = vmatpush1.msra.mxu0 0.0
    %271 = vmatprep.mubr.f32.mxu0 0.0
    %272 = vmatmul.mubr.f32.gmra.mrb[0].mxu0 %v59
    %v273 = vpop.f32.mrb[0].mxu0
    %v274 = vadd.f32 0.0, %v273
    %v275 = vpop.f32.mrb[0].mxu0
    %276 = vdwg.mxu0
    %s277 = scalar_lea.vmem [#allocation2], 64
    %v278 = vld [vmem:[%s277] sm:$0xff]
    %v279 = vld [vmem:[%s277 + $0x8] sm:$0xff]
    %280 = vmatprep.subr.mxu0 0.0
    %281 = vmatpush1.msra.mxu0 %v278
    %282 = vmatprep.subr.mxu0 0.0
    %283 = vmatpush1.msra.mxu0 %v279
    %284 = vmatprep.subr.mxu0 0.0
    %285 = vmatpush1.msra.mxu0 0.0
    %286 = vmatprep.subr.mxu0 0.0
    %287 = vmatpush1.msra.mxu0 0.0
    %288 = vmatprep.subr.mxu0 0.0
    %289 = vmatpush1.msra.mxu0 0.0
    %290 = vmatprep.subr.mxu0 0.0
    %291 = vmatpush1.msra.mxu0 0.0
    %292 = vmatprep.subr.mxu0 0.0
    %293 = vmatpush1.msra.mxu0 0.0
    %294 = vmatprep.subr.mxu0 0.0
    %295 = vmatpush1.msra.mxu0 0.0
    %296 = vmatprep.subr.mxu0 0.0
    %297 = vmatpush1.msra.mxu0 0.0
    %298 = vmatprep.subr.mxu0 0.0
    %299 = vmatpush1.msra.mxu0 0.0
    %300 = vmatprep.subr.mxu0 0.0
    %301 = vmatpush1.msra.mxu0 0.0
    %302 = vmatprep.subr.mxu0 0.0
    %303 = vmatpush1.msra.mxu0 0.0
    %304 = vmatprep.subr.mxu0 0.0
    %305 = vmatpush1.msra.mxu0 0.0
    %306 = vmatprep.subr.mxu0 0.0
    %307 = vmatpush1.msra.mxu0 0.0
    %308 = vmatprep.subr.mxu0 0.0
    %309 = vmatpush1.msra.mxu0 0.0
    %310 = vmatprep.subr.mxu0 0.0
    %311 = vmatpush1.msra.mxu0 0.0
    %312 = vmatprep.subr.mxu0 0.0
    %313 = vmatpush1.msra.mxu0 0.0
    %314 = vmatprep.subr.mxu0 0.0
    %315 = vmatpush1.msra.mxu0 0.0
    %316 = vmatprep.subr.mxu0 0.0
    %317 = vmatpush1.msra.mxu0 0.0
    %318 = vmatprep.subr.mxu0 0.0
    %319 = vmatpush1.msra.mxu0 0.0
    %320 = vmatprep.subr.mxu0 0.0
    %321 = vmatpush1.msra.mxu0 0.0
    %322 = vmatprep.subr.mxu0 0.0
    %323 = vmatpush1.msra.mxu0 0.0
    %324 = vmatprep.subr.mxu0 0.0
    %325 = vmatpush1.msra.mxu0 0.0
    %326 = vmatprep.subr.mxu0 0.0
    %327 = vmatpush1.msra.mxu0 0.0
    %328 = vmatprep.subr.mxu0 0.0
    %329 = vmatpush1.msra.mxu0 0.0
    %330 = vmatprep.subr.mxu0 0.0
    %331 = vmatpush1.msra.mxu0 0.0
    %332 = vmatprep.subr.mxu0 0.0
    %333 = vmatpush1.msra.mxu0 0.0
    %334 = vmatprep.subr.mxu0 0.0
    %335 = vmatpush1.msra.mxu0 0.0
    %336 = vmatprep.subr.mxu0 0.0
    %337 = vmatpush1.msra.mxu0 0.0
    %338 = vmatprep.subr.mxu0 0.0
    %339 = vmatpush1.msra.mxu0 0.0
    %340 = vmatprep.subr.mxu0 0.0
    %341 = vmatpush1.msra.mxu0 0.0
    %342 = vmatprep.subr.mxu0 0.0
    %343 = vmatpush1.msra.mxu0 0.0
    %344 = vmatprep.mubr.f32.mxu0 0.0
    %345 = vmatmul.mubr.f32.gmra.mrb[0].mxu0 %v59
    %v346 = vpop.f32.mrb[0].mxu0
    %v347 = vadd.f32 0.0, %v346
    %v348 = vpop.f32.mrb[0].mxu0
    %349 = vdwg.mxu0
    %s350 = scalar_lea.vmem [#allocation2], 80
    %v351 = vld [vmem:[%s350] sm:$0xff]
    %v352 = vld [vmem:[%s350 + $0x8] sm:$0xff]
    %353 = vmatprep.subr.mxu0 0.0
    %354 = vmatpush1.msra.mxu0 %v351
    %355 = vmatprep.subr.mxu0 0.0
    %356 = vmatpush1.msra.mxu0 %v352
    %357 = vmatprep.subr.mxu0 0.0
    %358 = vmatpush1.msra.mxu0 0.0
    %359 = vmatprep.subr.mxu0 0.0
    %360 = vmatpush1.msra.mxu0 0.0
    %361 = vmatprep.subr.mxu0 0.0
    %362 = vmatpush1.msra.mxu0 0.0
    %363 = vmatprep.subr.mxu0 0.0
    %364 = vmatpush1.msra.mxu0 0.0
    %365 = vmatprep.subr.mxu0 0.0
    %366 = vmatpush1.msra.mxu0 0.0
    %367 = vmatprep.subr.mxu0 0.0
    %368 = vmatpush1.msra.mxu0 0.0
    %369 = vmatprep.subr.mxu0 0.0
    %370 = vmatpush1.msra.mxu0 0.0
    %371 = vmatprep.subr.mxu0 0.0
    %372 = vmatpush1.msra.mxu0 0.0
    %373 = vmatprep.subr.mxu0 0.0
    %374 = vmatpush1.msra.mxu0 0.0
    %375 = vmatprep.subr.mxu0 0.0
    %376 = vmatpush1.msra.mxu0 0.0
    %377 = vmatprep.subr.mxu0 0.0
    %378 = vmatpush1.msra.mxu0 0.0
    %379 = vmatprep.subr.mxu0 0.0
    %380 = vmatpush1.msra.mxu0 0.0
    %381 = vmatprep.subr.mxu0 0.0
    %382 = vmatpush1.msra.mxu0 0.0
    %383 = vmatprep.subr.mxu0 0.0
    %384 = vmatpush1.msra.mxu0 0.0
    %385 = vmatprep.subr.mxu0 0.0
    %386 = vmatpush1.msra.mxu0 0.0
    %387 = vmatprep.subr.mxu0 0.0
    %388 = vmatpush1.msra.mxu0 0.0
    %389 = vmatprep.subr.mxu0 0.0
    %390 = vmatpush1.msra.mxu0 0.0
    %391 = vmatprep.subr.mxu0 0.0
    %392 = vmatpush1.msra.mxu0 0.0
    %393 = vmatprep.subr.mxu0 0.0
    %394 = vmatpush1.msra.mxu0 0.0
    %395 = vmatprep.subr.mxu0 0.0
    %396 = vmatpush1.msra.mxu0 0.0
    %397 = vmatprep.subr.mxu0 0.0
    %398 = vmatpush1.msra.mxu0 0.0
    %399 = vmatprep.subr.mxu0 0.0
    %400 = vmatpush1.msra.mxu0 0.0
    %401 = vmatprep.subr.mxu0 0.0
    %402 = vmatpush1.msra.mxu0 0.0
    %403 = vmatprep.subr.mxu0 0.0
    %404 = vmatpush1.msra.mxu0 0.0
    %405 = vmatprep.subr.mxu0 0.0
    %406 = vmatpush1.msra.mxu0 0.0
    %407 = vmatprep.subr.mxu0 0.0
    %408 = vmatpush1.msra.mxu0 0.0
    %409 = vmatprep.subr.mxu0 0.0
    %410 = vmatpush1.msra.mxu0 0.0
    %411 = vmatprep.subr.mxu0 0.0
    %412 = vmatpush1.msra.mxu0 0.0
    %413 = vmatprep.subr.mxu0 0.0
    %414 = vmatpush1.msra.mxu0 0.0
    %415 = vmatprep.subr.mxu0 0.0
    %416 = vmatpush1.msra.mxu0 0.0
    %417 = vmatprep.mubr.f32.mxu0 0.0
    %418 = vmatmul.mubr.f32.gmra.mrb[0].mxu0 %v59
    %v419 = vpop.f32.mrb[0].mxu0
    %v420 = vadd.f32 0.0, %v419
    %v421 = vpop.f32.mrb[0].mxu0
    %422 = vdwg.mxu0
    %s423 = scalar_lea.vmem [#allocation2], 96
    %v424 = vld [vmem:[%s423] sm:$0xff]
    %v425 = vld [vmem:[%s423 + $0x8] sm:$0xff]
    %426 = vmatprep.subr.mxu0 0.0
    %427 = vmatpush1.msra.mxu0 %v424
    %428 = vmatprep.subr.mxu0 0.0
    %429 = vmatpush1.msra.mxu0 %v425
    %430 = vmatprep.subr.mxu0 0.0
    %431 = vmatpush1.msra.mxu0 0.0
    %432 = vmatprep.subr.mxu0 0.0
    %433 = vmatpush1.msra.mxu0 0.0
    %434 = vmatprep.subr.mxu0 0.0
    %435 = vmatpush1.msra.mxu0 0.0
    %436 = vmatprep.subr.mxu0 0.0
    %437 = vmatpush1.msra.mxu0 0.0
    %438 = vmatprep.subr.mxu0 0.0
    %439 = vmatpush1.msra.mxu0 0.0
    %440 = vmatprep.subr.mxu0 0.0
    %441 = vmatpush1.msra.mxu0 0.0
    %442 = vmatprep.subr.mxu0 0.0
    %443 = vmatpush1.msra.mxu0 0.0
    %444 = vmatprep.subr.mxu0 0.0
    %445 = vmatpush1.msra.mxu0 0.0
    %446 = vmatprep.subr.mxu0 0.0
    %447 = vmatpush1.msra.mxu0 0.0
    %448 = vmatprep.subr.mxu0 0.0
    %449 = vmatpush1.msra.mxu0 0.0
    %450 = vmatprep.subr.mxu0 0.0
    %451 = vmatpush1.msra.mxu0 0.0
    %452 = vmatprep.subr.mxu0 0.0
    %453 = vmatpush1.msra.mxu0 0.0
    %454 = vmatprep.subr.mxu0 0.0
    %455 = vmatpush1.msra.mxu0 0.0
    %456 = vmatprep.subr.mxu0 0.0
    %457 = vmatpush1.msra.mxu0 0.0
    %458 = vmatprep.subr.mxu0 0.0
    %459 = vmatpush1.msra.mxu0 0.0
    %460 = vmatprep.subr.mxu0 0.0
    %461 = vmatpush1.msra.mxu0 0.0
    %462 = vmatprep.subr.mxu0 0.0
    %463 = vmatpush1.msra.mxu0 0.0
    %464 = vmatprep.subr.mxu0 0.0
    %465 = vmatpush1.msra.mxu0 0.0
    %466 = vmatprep.subr.mxu0 0.0
    %467 = vmatpush1.msra.mxu0 0.0
    %468 = vmatprep.subr.mxu0 0.0
    %469 = vmatpush1.msra.mxu0 0.0
    %470 = vmatprep.subr.mxu0 0.0
    %471 = vmatpush1.msra.mxu0 0.0
    %472 = vmatprep.subr.mxu0 0.0
    %473 = vmatpush1.msra.mxu0 0.0
    %474 = vmatprep.subr.mxu0 0.0
    %475 = vmatpush1.msra.mxu0 0.0
    %476 = vmatprep.subr.mxu0 0.0
    %477 = vmatpush1.msra.mxu0 0.0
    %478 = vmatprep.subr.mxu0 0.0
    %479 = vmatpush1.msra.mxu0 0.0
    %480 = vmatprep.subr.mxu0 0.0
    %481 = vmatpush1.msra.mxu0 0.0
    %482 = vmatprep.subr.mxu0 0.0
    %483 = vmatpush1.msra.mxu0 0.0
    %484 = vmatprep.subr.mxu0 0.0
    %485 = vmatpush1.msra.mxu0 0.0
    %486 = vmatprep.subr.mxu0 0.0
    %487 = vmatpush1.msra.mxu0 0.0
    %488 = vmatprep.subr.mxu0 0.0
    %489 = vmatpush1.msra.mxu0 0.0
    %490 = vmatprep.mubr.f32.mxu0 0.0
    %491 = vmatmul.mubr.f32.gmra.mrb[0].mxu0 %v59
    %v492 = vpop.f32.mrb[0].mxu0
    %v493 = vadd.f32 0.0, %v492
    %v494 = vpop.f32.mrb[0].mxu0
    %495 = vdwg.mxu0
    %s496 = scalar_lea.vmem [#allocation2], 112
    %v497 = vld [vmem:[%s496] sm:$0xff]
    %v498 = vld [vmem:[%s496 + $0x8] sm:$0xff]
    %499 = vmatprep.subr.mxu0 0.0
    %500 = vmatpush1.msra.mxu0 %v497
    %501 = vmatprep.subr.mxu0 0.0
    %502 = vmatpush1.msra.mxu0 %v498
    %503 = vmatprep.subr.mxu0 0.0
    %504 = vmatpush1.msra.mxu0 0.0
    %505 = vmatprep.subr.mxu0 0.0
    %506 = vmatpush1.msra.mxu0 0.0
    %507 = vmatprep.subr.mxu0 0.0
    %508 = vmatpush1.msra.mxu0 0.0
    %509 = vmatprep.subr.mxu0 0.0
    %510 = vmatpush1.msra.mxu0 0.0
    %511 = vmatprep.subr.mxu0 0.0
    %512 = vmatpush1.msra.mxu0 0.0
    %513 = vmatprep.subr.mxu0 0.0
    %514 = vmatpush1.msra.mxu0 0.0
    %515 = vmatprep.subr.mxu0 0.0
    %516 = vmatpush1.msra.mxu0 0.0
    %517 = vmatprep.subr.mxu0 0.0
    %518 = vmatpush1.msra.mxu0 0.0
    %519 = vmatprep.subr.mxu0 0.0
    %520 = vmatpush1.msra.mxu0 0.0
    %521 = vmatprep.subr.mxu0 0.0
    %522 = vmatpush1.msra.mxu0 0.0
    %523 = vmatprep.subr.mxu0 0.0
    %524 = vmatpush1.msra.mxu0 0.0
    %525 = vmatprep.subr.mxu0 0.0
    %526 = vmatpush1.msra.mxu0 0.0
    %527 = vmatprep.subr.mxu0 0.0
    %528 = vmatpush1.msra.mxu0 0.0
    %529 = vmatprep.subr.mxu0 0.0
    %530 = vmatpush1.msra.mxu0 0.0
    %531 = vmatprep.subr.mxu0 0.0
    %532 = vmatpush1.msra.mxu0 0.0
    %533 = vmatprep.subr.mxu0 0.0
    %534 = vmatpush1.msra.mxu0 0.0
    %535 = vmatprep.subr.mxu0 0.0
    %536 = vmatpush1.msra.mxu0 0.0
    %537 = vmatprep.subr.mxu0 0.0
    %538 = vmatpush1.msra.mxu0 0.0
    %539 = vmatprep.subr.mxu0 0.0
    %540 = vmatpush1.msra.mxu0 0.0
    %541 = vmatprep.subr.mxu0 0.0
    %542 = vmatpush1.msra.mxu0 0.0
    %543 = vmatprep.subr.mxu0 0.0
    %544 = vmatpush1.msra.mxu0 0.0
    %545 = vmatprep.subr.mxu0 0.0
    %546 = vmatpush1.msra.mxu0 0.0
    %547 = vmatprep.subr.mxu0 0.0
    %548 = vmatpush1.msra.mxu0 0.0
    %549 = vmatprep.subr.mxu0 0.0
    %550 = vmatpush1.msra.mxu0 0.0
    %551 = vmatprep.subr.mxu0 0.0
    %552 = vmatpush1.msra.mxu0 0.0
    %553 = vmatprep.subr.mxu0 0.0
    %554 = vmatpush1.msra.mxu0 0.0
    %555 = vmatprep.subr.mxu0 0.0
    %556 = vmatpush1.msra.mxu0 0.0
    %557 = vmatprep.subr.mxu0 0.0
    %558 = vmatpush1.msra.mxu0 0.0
    %559 = vmatprep.subr.mxu0 0.0
    %560 = vmatpush1.msra.mxu0 0.0
    %561 = vmatprep.subr.mxu0 0.0
    %562 = vmatpush1.msra.mxu0 0.0
    %563 = vmatprep.mubr.f32.mxu0 0.0
    %564 = vmatmul.mubr.f32.gmra.mrb[0].mxu0 %v59
    %v565 = vpop.f32.mrb[0].mxu0
    %v566 = vadd.f32 0.0, %v565
    %v567 = vpop.f32.mrb[0].mxu0
    %568 = vdwg.mxu0
    %v570 = vrot.slane %v128, 7
    %v573 = vrot.slane %v201, 6
    %v576 = vrot.slane %v274, 5
    %v579 = vrot.slane %v347, 4
    %v582 = vrot.slane %v420, 3
    %v585 = vrot.slane %v493, 2
    %v588 = vrot.slane %v566, 1
    %vm590 = vcmask 1040384
    %v591 = vsel %vm590, %v49, %v570
    %vm592 = vcmask 1041408
    %v593 = vsel %vm592, %v591, %v573
    %vm594 = vcmask 1042432
    %v595 = vsel %vm594, %v593, %v576
    %vm596 = vcmask 1043456
    %v597 = vsel %vm596, %v595, %v579
    %vm598 = vcmask 1044480
    %v599 = vsel %vm598, %v597, %v582
    %vm600 = vcmask 1045504
    %v601 = vsel %vm600, %v599, %v585
    %vm602 = vcmask 1046528
    %v603 = vsel %vm602, %v601, %v588
    %vm604 = vcmask 64512
    %v606 = vsel %vm604, %v50, 0
    %v609 = vsel %vm604, %v51, 0
    %v612 = vsel %vm604, %v52, 0
    %v615 = vsel %vm604, %v53, 0
    %617 = vmatprep.subr.mxu0 0.0
    %618 = vmatpush1.msra.mxu0 %v603
    %619 = vmatprep.subr.mxu0 0.0
    %620 = vmatpush1.msra.mxu0 0.0
    %621 = vmatprep.subr.mxu0 0.0
    %622 = vmatpush1.msra.mxu0 0.0
    %623 = vmatprep.subr.mxu0 0.0
    %624 = vmatpush1.msra.mxu0 0.0
    %625 = vmatprep.subr.mxu0 0.0
    %626 = vmatpush1.msra.mxu0 0.0
    %627 = vmatprep.subr.mxu0 0.0
    %628 = vmatpush1.msra.mxu0 0.0
    %629 = vmatprep.subr.mxu0 0.0
    %630 = vmatpush1.msra.mxu0 0.0
    %631 = vmatprep.subr.mxu0 0.0
    %632 = vmatpush1.msra.mxu0 0.0
    %633 = vmatprep.subr.mxu0 0.0
    %634 = vmatpush1.msra.mxu0 0.0
    %635 = vmatprep.subr.mxu0 0.0
    %636 = vmatpush1.msra.mxu0 0.0
    %637 = vmatprep.subr.mxu0 0.0
    %638 = vmatpush1.msra.mxu0 0.0
    %639 = vmatprep.subr.mxu0 0.0
    %640 = vmatpush1.msra.mxu0 0.0
    %641 = vmatprep.subr.mxu0 0.0
    %642 = vmatpush1.msra.mxu0 0.0
    %643 = vmatprep.subr.mxu0 0.0
    %644 = vmatpush1.msra.mxu0 0.0
    %645 = vmatprep.subr.mxu0 0.0
    %646 = vmatpush1.msra.mxu0 0.0
    %647 = vmatprep.subr.mxu0 0.0
    %648 = vmatpush1.msra.mxu0 0.0
    %649 = vmatprep.subr.mxu0 0.0
    %650 = vmatpush1.msra.mxu0 0.0
    %651 = vmatprep.subr.mxu0 0.0
    %652 = vmatpush1.msra.mxu0 0.0
    %653 = vmatprep.subr.mxu0 0.0
    %654 = vmatpush1.msra.mxu0 0.0
    %655 = vmatprep.subr.mxu0 0.0
    %656 = vmatpush1.msra.mxu0 0.0
    %657 = vmatprep.subr.mxu0 0.0
    %658 = vmatpush1.msra.mxu0 0.0
    %659 = vmatprep.subr.mxu0 0.0
    %660 = vmatpush1.msra.mxu0 0.0
    %661 = vmatprep.subr.mxu0 0.0
    %662 = vmatpush1.msra.mxu0 0.0
    %663 = vmatprep.subr.mxu0 0.0
    %664 = vmatpush1.msra.mxu0 0.0
    %665 = vmatprep.subr.mxu0 0.0
    %666 = vmatpush1.msra.mxu0 0.0
    %667 = vmatprep.subr.mxu0 0.0
    %668 = vmatpush1.msra.mxu0 0.0
    %669 = vmatprep.subr.mxu0 0.0
    %670 = vmatpush1.msra.mxu0 0.0
    %671 = vmatprep.subr.mxu0 0.0
    %672 = vmatpush1.msra.mxu0 0.0
    %673 = vmatprep.subr.mxu0 0.0
    %674 = vmatpush1.msra.mxu0 0.0
    %675 = vmatprep.subr.mxu0 0.0
    %676 = vmatpush1.msra.mxu0 0.0
    %677 = vmatprep.subr.mxu0 0.0
    %678 = vmatpush1.msra.mxu0 0.0
    %679 = vmatprep.subr.mxu0 0.0
    %680 = vmatpush1.msra.mxu0 0.0
    %681 = vmatprep.mubr.f32.mxu0 0.0
    %682 = vmatmul.mubr.f32.gmra.mrb[0].mxu0 %v606
    %v683 = vpop.f32.mrb[0].mxu0
    %v684 = vadd.f32 0.0, %v683
    %v685 = vpop.f32.mrb[0].mxu0
    %686 = vmatprep.mubr.f32.mxu0 0.0
    %687 = vmatmul.mubr.f32.gmra.mrb[0].mxu0 %v609
    %v688 = vpop.f32.mrb[0].mxu0
    %v689 = vadd.f32 0.0, %v688
    %v690 = vpop.f32.mrb[0].mxu0
    %691 = vmatprep.mubr.f32.mxu0 0.0
    %692 = vmatmul.mubr.f32.gmra.mrb[0].mxu0 %v612
    %v693 = vpop.f32.mrb[0].mxu0
    %v694 = vadd.f32 0.0, %v693
    %v695 = vpop.f32.mrb[0].mxu0
    %696 = vmatprep.mubr.f32.mxu0 0.0
    %697 = vmatmul.mubr.f32.gmra.mrb[0].mxu0 %v615
    %v698 = vpop.f32.mrb[0].mxu0
    %v699 = vadd.f32 0.0, %v698
    %v700 = vpop.f32.mrb[0].mxu0
    %701 = vdwg.mxu0
    %v702 = vrot.slane %v49, 1
    %v704 = vrot.slane %v201, 7
    %v706 = vrot.slane %v274, 6
    %v708 = vrot.slane %v347, 5
    %v710 = vrot.slane %v420, 4
    %v712 = vrot.slane %v493, 3
    %v714 = vrot.slane %v566, 2
    %v716 = vsel %vm590, %v702, %v128
    %v717 = vsel %vm592, %v716, %v704
    %v718 = vsel %vm594, %v717, %v706
    %v719 = vsel %vm596, %v718, %v708
    %v720 = vsel %vm598, %v719, %v710
    %v721 = vsel %vm600, %v720, %v712
    %v722 = vsel %vm602, %v721, %v714
    %723 = vmatprep.subr.mxu0 0.0
    %724 = vmatpush1.msra.mxu0 %v722
    %725 = vmatprep.subr.mxu0 0.0
    %726 = vmatpush1.msra.mxu0 0.0
    %727 = vmatprep.subr.mxu0 0.0
    %728 = vmatpush1.msra.mxu0 0.0
    %729 = vmatprep.subr.mxu0 0.0
    %730 = vmatpush1.msra.mxu0 0.0
    %731 = vmatprep.subr.mxu0 0.0
    %732 = vmatpush1.msra.mxu0 0.0
    %733 = vmatprep.subr.mxu0 0.0
    %734 = vmatpush1.msra.mxu0 0.0
    %735 = vmatprep.subr.mxu0 0.0
    %736 = vmatpush1.msra.mxu0 0.0
    %737 = vmatprep.subr.mxu0 0.0
    %738 = vmatpush1.msra.mxu0 0.0
    %739 = vmatprep.subr.mxu0 0.0
    %740 = vmatpush1.msra.mxu0 0.0
    %741 = vmatprep.subr.mxu0 0.0
    %742 = vmatpush1.msra.mxu0 0.0
    %743 = vmatprep.subr.mxu0 0.0
    %744 = vmatpush1.msra.mxu0 0.0
    %745 = vmatprep.subr.mxu0 0.0
    %746 = vmatpush1.msra.mxu0 0.0
    %747 = vmatprep.subr.mxu0 0.0
    %748 = vmatpush1.msra.mxu0 0.0
    %749 = vmatprep.subr.mxu0 0.0
    %750 = vmatpush1.msra.mxu0 0.0
    %751 = vmatprep.subr.mxu0 0.0
    %752 = vmatpush1.msra.mxu0 0.0
    %753 = vmatprep.subr.mxu0 0.0
    %754 = vmatpush1.msra.mxu0 0.0
    %755 = vmatprep.subr.mxu0 0.0
    %756 = vmatpush1.msra.mxu0 0.0
    %757 = vmatprep.subr.mxu0 0.0
    %758 = vmatpush1.msra.mxu0 0.0
    %759 = vmatprep.subr.mxu0 0.0
    %760 = vmatpush1.msra.mxu0 0.0
    %761 = vmatprep.subr.mxu0 0.0
    %762 = vmatpush1.msra.mxu0 0.0
    %763 = vmatprep.subr.mxu0 0.0
    %764 = vmatpush1.msra.mxu0 0.0
    %765 = vmatprep.subr.mxu0 0.0
    %766 = vmatpush1.msra.mxu0 0.0
    %767 = vmatprep.subr.mxu0 0.0
    %768 = vmatpush1.msra.mxu0 0.0
    %769 = vmatprep.subr.mxu0 0.0
    %770 = vmatpush1.msra.mxu0 0.0
    %771 = vmatprep.subr.mxu0 0.0
    %772 = vmatpush1.msra.mxu0 0.0
    %773 = vmatprep.subr.mxu0 0.0
    %774 = vmatpush1.msra.mxu0 0.0
    %775 = vmatprep.subr.mxu0 0.0
    %776 = vmatpush1.msra.mxu0 0.0
    %777 = vmatprep.subr.mxu0 0.0
    %778 = vmatpush1.msra.mxu0 0.0
    %779 = vmatprep.subr.mxu0 0.0
    %780 = vmatpush1.msra.mxu0 0.0
    %781 = vmatprep.subr.mxu0 0.0
    %782 = vmatpush1.msra.mxu0 0.0
    %783 = vmatprep.subr.mxu0 0.0
    %784 = vmatpush1.msra.mxu0 0.0
    %785 = vmatprep.subr.mxu0 0.0
    %786 = vmatpush1.msra.mxu0 0.0
    %787 = vmatprep.mubr.f32.mxu0 0.0
    %788 = vmatmul.mubr.f32.gmra.mrb[0].mxu0 %v606
    %v789 = vpop.f32.mrb[0].mxu0
    %v790 = vadd.f32 0.0, %v789
    %v791 = vpop.f32.mrb[0].mxu0
    %792 = vmatprep.mubr.f32.mxu0 0.0
    %793 = vmatmul.mubr.f32.gmra.mrb[0].mxu0 %v609
    %v794 = vpop.f32.mrb[0].mxu0
    %v795 = vadd.f32 0.0, %v794
    %v796 = vpop.f32.mrb[0].mxu0
    %797 = vmatprep.mubr.f32.mxu0 0.0
    %798 = vmatmul.mubr.f32.gmra.mrb[0].mxu0 %v612
    %v799 = vpop.f32.mrb[0].mxu0
    %v800 = vadd.f32 0.0, %v799
    %v801 = vpop.f32.mrb[0].mxu0
    %802 = vmatprep.mubr.f32.mxu0 0.0
    %803 = vmatmul.mubr.f32.gmra.mrb[0].mxu0 %v615
    %v804 = vpop.f32.mrb[0].mxu0
    %v805 = vadd.f32 0.0, %v804
    %v806 = vpop.f32.mrb[0].mxu0
    %807 = vdwg.mxu0
    %v808 = vmax.f32 %v684, 0.0
    %v809 = vmax.f32 %v689, 0.0
    %v810 = vmax.f32 %v694, 0.0
    %v811 = vmax.f32 %v699, 0.0
    %v812 = vmax.f32 %v790, 0.0
    %v813 = vmax.f32 %v795, 0.0
    %v814 = vmax.f32 %v800, 0.0
    %v815 = vmax.f32 %v805, 0.0
    %v816 = vld [vmem:[#allocation5] sm:$0xff]
    %v817 = vld [vmem:[#allocation5 + $0x8] sm:$0xff]
    %v818 = vld [vmem:[#allocation5 + $0x10] sm:$0xff]
    %v819 = vld [vmem:[#allocation5 + $0x18] sm:$0xff]
    %v820 = vld [vmem:[#allocation5 + $0x20] sm:$0xff]
    %v821 = vld [vmem:[#allocation5 + $0x28] sm:$0xff]
    %v822 = vld [vmem:[#allocation5 + $0x30] sm:$0xff]
    %v823 = vld [vmem:[#allocation5 + $0x38] sm:$0xff]
    %v825 = vsel %vm57, %v808, 0
    %v828 = vsel %vm57, %v809, 0
    %v831 = vsel %vm57, %v810, 0
    %v834 = vsel %vm57, %v811, 0
    %v837 = vsel %vm57, %v812, 0
    %v840 = vsel %vm57, %v813, 0
    %v843 = vsel %vm57, %v814, 0
    %v846 = vsel %vm57, %v815, 0
    %848 = vmatprep.subr.mxu0 0.0
    %849 = vmatpush1.msra.mxu0 %v55
    %850 = vmatprep.subr.mxu0 0.0
    %851 = vmatpush1.msra.mxu0 %v56
    %852 = vmatprep.subr.mxu0 0.0
    %853 = vmatpush1.msra.mxu0 0.0
    %854 = vmatprep.subr.mxu0 0.0
    %855 = vmatpush1.msra.mxu0 0.0
    %856 = vmatprep.subr.mxu0 0.0
    %857 = vmatpush1.msra.mxu0 0.0
    %858 = vmatprep.subr.mxu0 0.0
    %859 = vmatpush1.msra.mxu0 0.0
    %860 = vmatprep.subr.mxu0 0.0
    %861 = vmatpush1.msra.mxu0 0.0
    %862 = vmatprep.subr.mxu0 0.0
    %863 = vmatpush1.msra.mxu0 0.0
    %864 = vmatprep.subr.mxu0 0.0
    %865 = vmatpush1.msra.mxu0 0.0
    %866 = vmatprep.subr.mxu0 0.0
    %867 = vmatpush1.msra.mxu0 0.0
    %868 = vmatprep.subr.mxu0 0.0
    %869 = vmatpush1.msra.mxu0 0.0
    %870 = vmatprep.subr.mxu0 0.0
    %871 = vmatpush1.msra.mxu0 0.0
    %872 = vmatprep.subr.mxu0 0.0
    %873 = vmatpush1.msra.mxu0 0.0
    %874 = vmatprep.subr.mxu0 0.0
    %875 = vmatpush1.msra.mxu0 0.0
    %876 = vmatprep.subr.mxu0 0.0
    %877 = vmatpush1.msra.mxu0 0.0
    %878 = vmatprep.subr.mxu0 0.0
    %879 = vmatpush1.msra.mxu0 0.0
    %880 = vmatprep.subr.mxu0 0.0
    %881 = vmatpush1.msra.mxu0 0.0
    %882 = vmatprep.subr.mxu0 0.0
    %883 = vmatpush1.msra.mxu0 0.0
    %884 = vmatprep.subr.mxu0 0.0
    %885 = vmatpush1.msra.mxu0 0.0
    %886 = vmatprep.subr.mxu0 0.0
    %887 = vmatpush1.msra.mxu0 0.0
    %888 = vmatprep.subr.mxu0 0.0
    %889 = vmatpush1.msra.mxu0 0.0
    %890 = vmatprep.subr.mxu0 0.0
    %891 = vmatpush1.msra.mxu0 0.0
    %892 = vmatprep.subr.mxu0 0.0
    %893 = vmatpush1.msra.mxu0 0.0
    %894 = vmatprep.subr.mxu0 0.0
    %895 = vmatpush1.msra.mxu0 0.0
    %896 = vmatprep.subr.mxu0 0.0
    %897 = vmatpush1.msra.mxu0 0.0
    %898 = vmatprep.subr.mxu0 0.0
    %899 = vmatpush1.msra.mxu0 0.0
    %900 = vmatprep.subr.mxu0 0.0
    %901 = vmatpush1.msra.mxu0 0.0
    %902 = vmatprep.subr.mxu0 0.0
    %903 = vmatpush1.msra.mxu0 0.0
    %904 = vmatprep.subr.mxu0 0.0
    %905 = vmatpush1.msra.mxu0 0.0
    %906 = vmatprep.subr.mxu0 0.0
    %907 = vmatpush1.msra.mxu0 0.0
    %908 = vmatprep.subr.mxu0 0.0
    %909 = vmatpush1.msra.mxu0 0.0
    %910 = vmatprep.subr.mxu0 0.0
    %911 = vmatpush1.msra.mxu0 0.0
    %912 = vmatprep.mubr.f32.mxu0 0.0
    %913 = vmatmul.mubr.f32.gmra.mrb[0].mxu0 %v825
    %v914 = vpop.f32.mrb[0].mxu0
    %v915 = vadd.f32 0.0, %v914
    %v916 = vpop.f32.mrb[0].mxu0
    %917 = vmatprep.mubr.f32.mxu0 0.0
    %918 = vmatmul.mubr.f32.gmra.mrb[0].mxu0 %v828
    %v919 = vpop.f32.mrb[0].mxu0
    %v920 = vadd.f32 0.0, %v919
    %v921 = vpop.f32.mrb[0].mxu0
    %922 = vmatprep.mubr.f32.mxu0 0.0
    %923 = vmatmul.mubr.f32.gmra.mrb[0].mxu0 %v831
    %v924 = vpop.f32.mrb[0].mxu0
    %v925 = vadd.f32 0.0, %v924
    %v926 = vpop.f32.mrb[0].mxu0
    %927 = vmatprep.mubr.f32.mxu0 0.0
    %928 = vmatmul.mubr.f32.gmra.mrb[0].mxu0 %v834
    %v929 = vpop.f32.mrb[0].mxu0
    %v930 = vadd.f32 0.0, %v929
    %v931 = vpop.f32.mrb[0].mxu0
    %932 = vmatprep.mubr.f32.mxu0 0.0
    %933 = vmatmul.mubr.f32.gmra.mrb[0].mxu0 %v837
    %v934 = vpop.f32.mrb[0].mxu0
    %v935 = vadd.f32 0.0, %v934
    %v936 = vpop.f32.mrb[0].mxu0
    %937 = vmatprep.mubr.f32.mxu0 0.0
    %938 = vmatmul.mubr.f32.gmra.mrb[0].mxu0 %v840
    %v939 = vpop.f32.mrb[0].mxu0
    %v940 = vadd.f32 0.0, %v939
    %v941 = vpop.f32.mrb[0].mxu0
    %942 = vmatprep.mubr.f32.mxu0 0.0
    %943 = vmatmul.mubr.f32.gmra.mrb[0].mxu0 %v843
    %v944 = vpop.f32.mrb[0].mxu0
    %v945 = vadd.f32 0.0, %v944
    %v946 = vpop.f32.mrb[0].mxu0
    %947 = vmatprep.mubr.f32.mxu0 0.0
    %948 = vmatmul.mubr.f32.gmra.mrb[0].mxu0 %v846
    %v949 = vpop.f32.mrb[0].mxu0
    %v950 = vadd.f32 0.0, %v949
    %v951 = vpop.f32.mrb[0].mxu0
    %952 = vdwg.mxu0
    %953 = vmatprep.subr.mxu0 0.0
    %954 = vmatpush1.msra.mxu0 %v132
    %955 = vmatprep.subr.mxu0 0.0
    %956 = vmatpush1.msra.mxu0 %v133
    %957 = vmatprep.subr.mxu0 0.0
    %958 = vmatpush1.msra.mxu0 0.0
    %959 = vmatprep.subr.mxu0 0.0
    %960 = vmatpush1.msra.mxu0 0.0
    %961 = vmatprep.subr.mxu0 0.0
    %962 = vmatpush1.msra.mxu0 0.0
    %963 = vmatprep.subr.mxu0 0.0
    %964 = vmatpush1.msra.mxu0 0.0
    %965 = vmatprep.subr.mxu0 0.0
    %966 = vmatpush1.msra.mxu0 0.0
    %967 = vmatprep.subr.mxu0 0.0
    %968 = vmatpush1.msra.mxu0 0.0
    %969 = vmatprep.subr.mxu0 0.0
    %970 = vmatpush1.msra.mxu0 0.0
    %971 = vmatprep.subr.mxu0 0.0
    %972 = vmatpush1.msra.mxu0 0.0
    %973 = vmatprep.subr.mxu0 0.0
    %974 = vmatpush1.msra.mxu0 0.0
    %975 = vmatprep.subr.mxu0 0.0
    %976 = vmatpush1.msra.mxu0 0.0
    %977 = vmatprep.subr.mxu0 0.0
    %978 = vmatpush1.msra.mxu0 0.0
    %979 = vmatprep.subr.mxu0 0.0
    %980 = vmatpush1.msra.mxu0 0.0
    %981 = vmatprep.subr.mxu0 0.0
    %982 = vmatpush1.msra.mxu0 0.0
    %983 = vmatprep.subr.mxu0 0.0
    %984 = vmatpush1.msra.mxu0 0.0
    %985 = vmatprep.subr.mxu0 0.0
    %986 = vmatpush1.msra.mxu0 0.0
    %987 = vmatprep.subr.mxu0 0.0
    %988 = vmatpush1.msra.mxu0 0.0
    %989 = vmatprep.subr.mxu0 0.0
    %990 = vmatpush1.msra.mxu0 0.0
    %991 = vmatprep.subr.mxu0 0.0
    %992 = vmatpush1.msra.mxu0 0.0
    %993 = vmatprep.subr.mxu0 0.0
    %994 = vmatpush1.msra.mxu0 0.0
    %995 = vmatprep.subr.mxu0 0.0
    %996 = vmatpush1.msra.mxu0 0.0
    %997 = vmatprep.subr.mxu0 0.0
    %998 = vmatpush1.msra.mxu0 0.0
    %999 = vmatprep.subr.mxu0 0.0
    %1000 = vmatpush1.msra.mxu0 0.0
    %1001 = vmatprep.subr.mxu0 0.0
    %1002 = vmatpush1.msra.mxu0 0.0
    %1003 = vmatprep.subr.mxu0 0.0
    %1004 = vmatpush1.msra.mxu0 0.0
    %1005 = vmatprep.subr.mxu0 0.0
    %1006 = vmatpush1.msra.mxu0 0.0
    %1007 = vmatprep.subr.mxu0 0.0
    %1008 = vmatpush1.msra.mxu0 0.0
    %1009 = vmatprep.subr.mxu0 0.0
    %1010 = vmatpush1.msra.mxu0 0.0
    %1011 = vmatprep.subr.mxu0 0.0
    %1012 = vmatpush1.msra.mxu0 0.0
    %1013 = vmatprep.subr.mxu0 0.0
    %1014 = vmatpush1.msra.mxu0 0.0
    %1015 = vmatprep.subr.mxu0 0.0
    %1016 = vmatpush1.msra.mxu0 0.0
    %1017 = vmatprep.mubr.f32.mxu0 0.0
    %1018 = vmatmul.mubr.f32.gmra.mrb[0].mxu0 %v825
    %v1019 = vpop.f32.mrb[0].mxu0
    %v1020 = vadd.f32 0.0, %v1019
    %v1021 = vpop.f32.mrb[0].mxu0
    %1022 = vmatprep.mubr.f32.mxu0 0.0
    %1023 = vmatmul.mubr.f32.gmra.mrb[0].mxu0 %v828
    %v1024 = vpop.f32.mrb[0].mxu0
    %v1025 = vadd.f32 0.0, %v1024
    %v1026 = vpop.f32.mrb[0].mxu0
    %1027 = vmatprep.mubr.f32.mxu0 0.0
    %1028 = vmatmul.mubr.f32.gmra.mrb[0].mxu0 %v831
    %v1029 = vpop.f32.mrb[0].mxu0
    %v1030 = vadd.f32 0.0, %v1029
    %v1031 = vpop.f32.mrb[0].mxu0
    %1032 = vmatprep.mubr.f32.mxu0 0.0
    %1033 = vmatmul.mubr.f32.gmra.mrb[0].mxu0 %v834
    %v1034 = vpop.f32.mrb[0].mxu0
    %v1035 = vadd.f32 0.0, %v1034
    %v1036 = vpop.f32.mrb[0].mxu0
    %1037 = vmatprep.mubr.f32.mxu0 0.0
    %1038 = vmatmul.mubr.f32.gmra.mrb[0].mxu0 %v837
    %v1039 = vpop.f32.mrb[0].mxu0
    %v1040 = vadd.f32 0.0, %v1039
    %v1041 = vpop.f32.mrb[0].mxu0
    %1042 = vmatprep.mubr.f32.mxu0 0.0
    %1043 = vmatmul.mubr.f32.gmra.mrb[0].mxu0 %v840
    %v1044 = vpop.f32.mrb[0].mxu0
    %v1045 = vadd.f32 0.0, %v1044
    %v1046 = vpop.f32.mrb[0].mxu0
    %1047 = vmatprep.mubr.f32.mxu0 0.0
    %1048 = vmatmul.mubr.f32.gmra.mrb[0].mxu0 %v843
    %v1049 = vpop.f32.mrb[0].mxu0
    %v1050 = vadd.f32 0.0, %v1049
    %v1051 = vpop.f32.mrb[0].mxu0
    %1052 = vmatprep.mubr.f32.mxu0 0.0
    %1053 = vmatmul.mubr.f32.gmra.mrb[0].mxu0 %v846
    %v1054 = vpop.f32.mrb[0].mxu0
    %v1055 = vadd.f32 0.0, %v1054
    %v1056 = vpop.f32.mrb[0].mxu0
    %1057 = vdwg.mxu0
    %1058 = vmatprep.subr.mxu0 0.0
    %1059 = vmatpush1.msra.mxu0 %v205
    %1060 = vmatprep.subr.mxu0 0.0
    %1061 = vmatpush1.msra.mxu0 %v206
    %1062 = vmatprep.subr.mxu0 0.0
    %1063 = vmatpush1.msra.mxu0 0.0
    %1064 = vmatprep.subr.mxu0 0.0
    %1065 = vmatpush1.msra.mxu0 0.0
    %1066 = vmatprep.subr.mxu0 0.0
    %1067 = vmatpush1.msra.mxu0 0.0
    %1068 = vmatprep.subr.mxu0 0.0
    %1069 = vmatpush1.msra.mxu0 0.0
    %1070 = vmatprep.subr.mxu0 0.0
    %1071 = vmatpush1.msra.mxu0 0.0
    %1072 = vmatprep.subr.mxu0 0.0
    %1073 = vmatpush1.msra.mxu0 0.0
    %1074 = vmatprep.subr.mxu0 0.0
    %1075 = vmatpush1.msra.mxu0 0.0
    %1076 = vmatprep.subr.mxu0 0.0
    %1077 = vmatpush1.msra.mxu0 0.0
    %1078 = vmatprep.subr.mxu0 0.0
    %1079 = vmatpush1.msra.mxu0 0.0
    %1080 = vmatprep.subr.mxu0 0.0
    %1081 = vmatpush1.msra.mxu0 0.0
    %1082 = vmatprep.subr.mxu0 0.0
    %1083 = vmatpush1.msra.mxu0 0.0
    %1084 = vmatprep.subr.mxu0 0.0
    %1085 = vmatpush1.msra.mxu0 0.0
    %1086 = vmatprep.subr.mxu0 0.0
    %1087 = vmatpush1.msra.mxu0 0.0
    %1088 = vmatprep.subr.mxu0 0.0
    %1089 = vmatpush1.msra.mxu0 0.0
    %1090 = vmatprep.subr.mxu0 0.0
    %1091 = vmatpush1.msra.mxu0 0.0
    %1092 = vmatprep.subr.mxu0 0.0
    %1093 = vmatpush1.msra.mxu0 0.0
    %1094 = vmatprep.subr.mxu0 0.0
    %1095 = vmatpush1.msra.mxu0 0.0
    %1096 = vmatprep.subr.mxu0 0.0
    %1097 = vmatpush1.msra.mxu0 0.0
    %1098 = vmatprep.subr.mxu0 0.0
    %1099 = vmatpush1.msra.mxu0 0.0
    %1100 = vmatprep.subr.mxu0 0.0
    %1101 = vmatpush1.msra.mxu0 0.0
    %1102 = vmatprep.subr.mxu0 0.0
    %1103 = vmatpush1.msra.mxu0 0.0
    %1104 = vmatprep.subr.mxu0 0.0
    %1105 = vmatpush1.msra.mxu0 0.0
    %1106 = vmatprep.subr.mxu0 0.0
    %1107 = vmatpush1.msra.mxu0 0.0
    %1108 = vmatprep.subr.mxu0 0.0
    %1109 = vmatpush1.msra.mxu0 0.0
    %1110 = vmatprep.subr.mxu0 0.0
    %1111 = vmatpush1.msra.mxu0 0.0
    %1112 = vmatprep.subr.mxu0 0.0
    %1113 = vmatpush1.msra.mxu0 0.0
    %1114 = vmatprep.subr.mxu0 0.0
    %1115 = vmatpush1.msra.mxu0 0.0
    %1116 = vmatprep.subr.mxu0 0.0
    %1117 = vmatpush1.msra.mxu0 0.0
    %1118 = vmatprep.subr.mxu0 0.0
    %1119 = vmatpush1.msra.mxu0 0.0
    %1120 = vmatprep.subr.mxu0 0.0
    %1121 = vmatpush1.msra.mxu0 0.0
    %1122 = vmatprep.mubr.f32.mxu0 0.0
    %1123 = vmatmul.mubr.f32.gmra.mrb[0].mxu0 %v825
    %v1124 = vpop.f32.mrb[0].mxu0
    %v1125 = vadd.f32 0.0, %v1124
    %v1126 = vpop.f32.mrb[0].mxu0
    %1127 = vmatprep.mubr.f32.mxu0 0.0
    %1128 = vmatmul.mubr.f32.gmra.mrb[0].mxu0 %v828
    %v1129 = vpop.f32.mrb[0].mxu0
    %v1130 = vadd.f32 0.0, %v1129
    %v1131 = vpop.f32.mrb[0].mxu0
    %1132 = vmatprep.mubr.f32.mxu0 0.0
    %1133 = vmatmul.mubr.f32.gmra.mrb[0].mxu0 %v831
    %v1134 = vpop.f32.mrb[0].mxu0
    %v1135 = vadd.f32 0.0, %v1134
    %v1136 = vpop.f32.mrb[0].mxu0
    %1137 = vmatprep.mubr.f32.mxu0 0.0
    %1138 = vmatmul.mubr.f32.gmra.mrb[0].mxu0 %v834
    %v1139 = vpop.f32.mrb[0].mxu0
    %v1140 = vadd.f32 0.0, %v1139
    %v1141 = vpop.f32.mrb[0].mxu0
    %1142 = vmatprep.mubr.f32.mxu0 0.0
    %1143 = vmatmul.mubr.f32.gmra.mrb[0].mxu0 %v837
    %v1144 = vpop.f32.mrb[0].mxu0
    %v1145 = vadd.f32 0.0, %v1144
    %v1146 = vpop.f32.mrb[0].mxu0
    %1147 = vmatprep.mubr.f32.mxu0 0.0
    %1148 = vmatmul.mubr.f32.gmra.mrb[0].mxu0 %v840
    %v1149 = vpop.f32.mrb[0].mxu0
    %v1150 = vadd.f32 0.0, %v1149
    %v1151 = vpop.f32.mrb[0].mxu0
    %1152 = vmatprep.mubr.f32.mxu0 0.0
    %1153 = vmatmul.mubr.f32.gmra.mrb[0].mxu0 %v843
    %v1154 = vpop.f32.mrb[0].mxu0
    %v1155 = vadd.f32 0.0, %v1154
    %v1156 = vpop.f32.mrb[0].mxu0
    %1157 = vmatprep.mubr.f32.mxu0 0.0
    %1158 = vmatmul.mubr.f32.gmra.mrb[0].mxu0 %v846
    %v1159 = vpop.f32.mrb[0].mxu0
    %v1160 = vadd.f32 0.0, %v1159
    %v1161 = vpop.f32.mrb[0].mxu0
    %1162 = vdwg.mxu0
    %1163 = vmatprep.subr.mxu0 0.0
    %1164 = vmatpush1.msra.mxu0 %v278
    %1165 = vmatprep.subr.mxu0 0.0
    %1166 = vmatpush1.msra.mxu0 %v279
    %1167 = vmatprep.subr.mxu0 0.0
    %1168 = vmatpush1.msra.mxu0 0.0
    %1169 = vmatprep.subr.mxu0 0.0
    %1170 = vmatpush1.msra.mxu0 0.0
    %1171 = vmatprep.subr.mxu0 0.0
    %1172 = vmatpush1.msra.mxu0 0.0
    %1173 = vmatprep.subr.mxu0 0.0
    %1174 = vmatpush1.msra.mxu0 0.0
    %1175 = vmatprep.subr.mxu0 0.0
    %1176 = vmatpush1.msra.mxu0 0.0
    %1177 = vmatprep.subr.mxu0 0.0
    %1178 = vmatpush1.msra.mxu0 0.0
    %1179 = vmatprep.subr.mxu0 0.0
    %1180 = vmatpush1.msra.mxu0 0.0
    %1181 = vmatprep.subr.mxu0 0.0
    %1182 = vmatpush1.msra.mxu0 0.0
    %1183 = vmatprep.subr.mxu0 0.0
    %1184 = vmatpush1.msra.mxu0 0.0
    %1185 = vmatprep.subr.mxu0 0.0
    %1186 = vmatpush1.msra.mxu0 0.0
    %1187 = vmatprep.subr.mxu0 0.0
    %1188 = vmatpush1.msra.mxu0 0.0
    %1189 = vmatprep.subr.mxu0 0.0
    %1190 = vmatpush1.msra.mxu0 0.0
    %1191 = vmatprep.subr.mxu0 0.0
    %1192 = vmatpush1.msra.mxu0 0.0
    %1193 = vmatprep.subr.mxu0 0.0
    %1194 = vmatpush1.msra.mxu0 0.0
    %1195 = vmatprep.subr.mxu0 0.0
    %1196 = vmatpush1.msra.mxu0 0.0
    %1197 = vmatprep.subr.mxu0 0.0
    %1198 = vmatpush1.msra.mxu0 0.0
    %1199 = vmatprep.subr.mxu0 0.0
    %1200 = vmatpush1.msra.mxu0 0.0
    %1201 = vmatprep.subr.mxu0 0.0
    %1202 = vmatpush1.msra.mxu0 0.0
    %1203 = vmatprep.subr.mxu0 0.0
    %1204 = vmatpush1.msra.mxu0 0.0
    %1205 = vmatprep.subr.mxu0 0.0
    %1206 = vmatpush1.msra.mxu0 0.0
    %1207 = vmatprep.subr.mxu0 0.0
    %1208 = vmatpush1.msra.mxu0 0.0
    %1209 = vmatprep.subr.mxu0 0.0
    %1210 = vmatpush1.msra.mxu0 0.0
    %1211 = vmatprep.subr.mxu0 0.0
    %1212 = vmatpush1.msra.mxu0 0.0
    %1213 = vmatprep.subr.mxu0 0.0
    %1214 = vmatpush1.msra.mxu0 0.0
    %1215 = vmatprep.subr.mxu0 0.0
    %1216 = vmatpush1.msra.mxu0 0.0
    %1217 = vmatprep.subr.mxu0 0.0
    %1218 = vmatpush1.msra.mxu0 0.0
    %1219 = vmatprep.subr.mxu0 0.0
    %1220 = vmatpush1.msra.mxu0 0.0
    %1221 = vmatprep.subr.mxu0 0.0
    %1222 = vmatpush1.msra.mxu0 0.0
    %1223 = vmatprep.subr.mxu0 0.0
    %1224 = vmatpush1.msra.mxu0 0.0
    %1225 = vmatprep.subr.mxu0 0.0
    %1226 = vmatpush1.msra.mxu0 0.0
    %1227 = vmatprep.mubr.f32.mxu0 0.0
    %1228 = vmatmul.mubr.f32.gmra.mrb[0].mxu0 %v825
    %v1229 = vpop.f32.mrb[0].mxu0
    %v1230 = vadd.f32 0.0, %v1229
    %v1231 = vpop.f32.mrb[0].mxu0
    %1232 = vmatprep.mubr.f32.mxu0 0.0
    %1233 = vmatmul.mubr.f32.gmra.mrb[0].mxu0 %v828
    %v1234 = vpop.f32.mrb[0].mxu0
    %v1235 = vadd.f32 0.0, %v1234
    %v1236 = vpop.f32.mrb[0].mxu0
    %1237 = vmatprep.mubr.f32.mxu0 0.0
    %1238 = vmatmul.mubr.f32.gmra.mrb[0].mxu0 %v831
    %v1239 = vpop.f32.mrb[0].mxu0
    %v1240 = vadd.f32 0.0, %v1239
    %v1241 = vpop.f32.mrb[0].mxu0
    %1242 = vmatprep.mubr.f32.mxu0 0.0
    %1243 = vmatmul.mubr.f32.gmra.mrb[0].mxu0 %v834
    %v1244 = vpop.f32.mrb[0].mxu0
    %v1245 = vadd.f32 0.0, %v1244
    %v1246 = vpop.f32.mrb[0].mxu0
    %1247 = vmatprep.mubr.f32.mxu0 0.0
    %1248 = vmatmul.mubr.f32.gmra.mrb[0].mxu0 %v837
    %v1249 = vpop.f32.mrb[0].mxu0
    %v1250 = vadd.f32 0.0, %v1249
    %v1251 = vpop.f32.mrb[0].mxu0
    %1252 = vmatprep.mubr.f32.mxu0 0.0
    %1253 = vmatmul.mubr.f32.gmra.mrb[0].mxu0 %v840
    %v1254 = vpop.f32.mrb[0].mxu0
    %v1255 = vadd.f32 0.0, %v1254
    %v1256 = vpop.f32.mrb[0].mxu0
    %1257 = vmatprep.mubr.f32.mxu0 0.0
    %1258 = vmatmul.mubr.f32.gmra.mrb[0].mxu0 %v843
    %v1259 = vpop.f32.mrb[0].mxu0
    %v1260 = vadd.f32 0.0, %v1259
    %v1261 = vpop.f32.mrb[0].mxu0
    %1262 = vmatprep.mubr.f32.mxu0 0.0
    %1263 = vmatmul.mubr.f32.gmra.mrb[0].mxu0 %v846
    %v1264 = vpop.f32.mrb[0].mxu0
    %v1265 = vadd.f32 0.0, %v1264
    %v1266 = vpop.f32.mrb[0].mxu0
    %1267 = vdwg.mxu0
    %1268 = vmatprep.subr.mxu0 0.0
    %1269 = vmatpush1.msra.mxu0 %v351
    %1270 = vmatprep.subr.mxu0 0.0
    %1271 = vmatpush1.msra.mxu0 %v352
    %1272 = vmatprep.subr.mxu0 0.0
    %1273 = vmatpush1.msra.mxu0 0.0
    %1274 = vmatprep.subr.mxu0 0.0
    %1275 = vmatpush1.msra.mxu0 0.0
    %1276 = vmatprep.subr.mxu0 0.0
    %1277 = vmatpush1.msra.mxu0 0.0
    %1278 = vmatprep.subr.mxu0 0.0
    %1279 = vmatpush1.msra.mxu0 0.0
    %1280 = vmatprep.subr.mxu0 0.0
    %1281 = vmatpush1.msra.mxu0 0.0
    %1282 = vmatprep.subr.mxu0 0.0
    %1283 = vmatpush1.msra.mxu0 0.0
    %1284 = vmatprep.subr.mxu0 0.0
    %1285 = vmatpush1.msra.mxu0 0.0
    %1286 = vmatprep.subr.mxu0 0.0
    %1287 = vmatpush1.msra.mxu0 0.0
    %1288 = vmatprep.subr.mxu0 0.0
    %1289 = vmatpush1.msra.mxu0 0.0
    %1290 = vmatprep.subr.mxu0 0.0
    %1291 = vmatpush1.msra.mxu0 0.0
    %1292 = vmatprep.subr.mxu0 0.0
    %1293 = vmatpush1.msra.mxu0 0.0
    %1294 = vmatprep.subr.mxu0 0.0
    %1295 = vmatpush1.msra.mxu0 0.0
    %1296 = vmatprep.subr.mxu0 0.0
    %1297 = vmatpush1.msra.mxu0 0.0
    %1298 = vmatprep.subr.mxu0 0.0
    %1299 = vmatpush1.msra.mxu0 0.0
    %1300 = vmatprep.subr.mxu0 0.0
    %1301 = vmatpush1.msra.mxu0 0.0
    %1302 = vmatprep.subr.mxu0 0.0
    %1303 = vmatpush1.msra.mxu0 0.0
    %1304 = vmatprep.subr.mxu0 0.0
    %1305 = vmatpush1.msra.mxu0 0.0
    %1306 = vmatprep.subr.mxu0 0.0
    %1307 = vmatpush1.msra.mxu0 0.0
    %1308 = vmatprep.subr.mxu0 0.0
    %1309 = vmatpush1.msra.mxu0 0.0
    %1310 = vmatprep.subr.mxu0 0.0
    %1311 = vmatpush1.msra.mxu0 0.0
    %1312 = vmatprep.subr.mxu0 0.0
    %1313 = vmatpush1.msra.mxu0 0.0
    %1314 = vmatprep.subr.mxu0 0.0
    %1315 = vmatpush1.msra.mxu0 0.0
    %1316 = vmatprep.subr.mxu0 0.0
    %1317 = vmatpush1.msra.mxu0 0.0
    %1318 = vmatprep.subr.mxu0 0.0
    %1319 = vmatpush1.msra.mxu0 0.0
    %1320 = vmatprep.subr.mxu0 0.0
    %1321 = vmatpush1.msra.mxu0 0.0
    %1322 = vmatprep.subr.mxu0 0.0
    %1323 = vmatpush1.msra.mxu0 0.0
    %1324 = vmatprep.subr.mxu0 0.0
    %1325 = vmatpush1.msra.mxu0 0.0
    %1326 = vmatprep.subr.mxu0 0.0
    %1327 = vmatpush1.msra.mxu0 0.0
    %1328 = vmatprep.subr.mxu0 0.0
    %1329 = vmatpush1.msra.mxu0 0.0
    %1330 = vmatprep.subr.mxu0 0.0
    %1331 = vmatpush1.msra.mxu0 0.0
    %1332 = vmatprep.mubr.f32.mxu0 0.0
    %1333 = vmatmul.mubr.f32.gmra.mrb[0].mxu0 %v825
    %v1334 = vpop.f32.mrb[0].mxu0
    %v1335 = vadd.f32 0.0, %v1334
    %v1336 = vpop.f32.mrb[0].mxu0
    %1337 = vmatprep.mubr.f32.mxu0 0.0
    %1338 = vmatmul.mubr.f32.gmra.mrb[0].mxu0 %v828
    %v1339 = vpop.f32.mrb[0].mxu0
    %v1340 = vadd.f32 0.0, %v1339
    %v1341 = vpop.f32.mrb[0].mxu0
    %1342 = vmatprep.mubr.f32.mxu0 0.0
    %1343 = vmatmul.mubr.f32.gmra.mrb[0].mxu0 %v831
    %v1344 = vpop.f32.mrb[0].mxu0
    %v1345 = vadd.f32 0.0, %v1344
    %v1346 = vpop.f32.mrb[0].mxu0
    %1347 = vmatprep.mubr.f32.mxu0 0.0
    %1348 = vmatmul.mubr.f32.gmra.mrb[0].mxu0 %v834
    %v1349 = vpop.f32.mrb[0].mxu0
    %v1350 = vadd.f32 0.0, %v1349
    %v1351 = vpop.f32.mrb[0].mxu0
    %1352 = vmatprep.mubr.f32.mxu0 0.0
    %1353 = vmatmul.mubr.f32.gmra.mrb[0].mxu0 %v837
    %v1354 = vpop.f32.mrb[0].mxu0
    %v1355 = vadd.f32 0.0, %v1354
    %v1356 = vpop.f32.mrb[0].mxu0
    %1357 = vmatprep.mubr.f32.mxu0 0.0
    %1358 = vmatmul.mubr.f32.gmra.mrb[0].mxu0 %v840
    %v1359 = vpop.f32.mrb[0].mxu0
    %v1360 = vadd.f32 0.0, %v1359
    %v1361 = vpop.f32.mrb[0].mxu0
    %1362 = vmatprep.mubr.f32.mxu0 0.0
    %1363 = vmatmul.mubr.f32.gmra.mrb[0].mxu0 %v843
    %v1364 = vpop.f32.mrb[0].mxu0
    %v1365 = vadd.f32 0.0, %v1364
    %v1366 = vpop.f32.mrb[0].mxu0
    %1367 = vmatprep.mubr.f32.mxu0 0.0
    %1368 = vmatmul.mubr.f32.gmra.mrb[0].mxu0 %v846
    %v1369 = vpop.f32.mrb[0].mxu0
    %v1370 = vadd.f32 0.0, %v1369
    %v1371 = vpop.f32.mrb[0].mxu0
    %1372 = vdwg.mxu0
    %1373 = vmatprep.subr.mxu0 0.0
    %1374 = vmatpush1.msra.mxu0 %v424
    %1375 = vmatprep.subr.mxu0 0.0
    %1376 = vmatpush1.msra.mxu0 %v425
    %1377 = vmatprep.subr.mxu0 0.0
    %1378 = vmatpush1.msra.mxu0 0.0
    %1379 = vmatprep.subr.mxu0 0.0
    %1380 = vmatpush1.msra.mxu0 0.0
    %1381 = vmatprep.subr.mxu0 0.0
    %1382 = vmatpush1.msra.mxu0 0.0
    %1383 = vmatprep.subr.mxu0 0.0
    %1384 = vmatpush1.msra.mxu0 0.0
    %1385 = vmatprep.subr.mxu0 0.0
    %1386 = vmatpush1.msra.mxu0 0.0
    %1387 = vmatprep.subr.mxu0 0.0
    %1388 = vmatpush1.msra.mxu0 0.0
    %1389 = vmatprep.subr.mxu0 0.0
    %1390 = vmatpush1.msra.mxu0 0.0
    %1391 = vmatprep.subr.mxu0 0.0
    %1392 = vmatpush1.msra.mxu0 0.0
    %1393 = vmatprep.subr.mxu0 0.0
    %1394 = vmatpush1.msra.mxu0 0.0
    %1395 = vmatprep.subr.mxu0 0.0
    %1396 = vmatpush1.msra.mxu0 0.0
    %1397 = vmatprep.subr.mxu0 0.0
    %1398 = vmatpush1.msra.mxu0 0.0
    %1399 = vmatprep.subr.mxu0 0.0
    %1400 = vmatpush1.msra.mxu0 0.0
    %1401 = vmatprep.subr.mxu0 0.0
    %1402 = vmatpush1.msra.mxu0 0.0
    %1403 = vmatprep.subr.mxu0 0.0
    %1404 = vmatpush1.msra.mxu0 0.0
    %1405 = vmatprep.subr.mxu0 0.0
    %1406 = vmatpush1.msra.mxu0 0.0
    %1407 = vmatprep.subr.mxu0 0.0
    %1408 = vmatpush1.msra.mxu0 0.0
    %1409 = vmatprep.subr.mxu0 0.0
    %1410 = vmatpush1.msra.mxu0 0.0
    %1411 = vmatprep.subr.mxu0 0.0
    %1412 = vmatpush1.msra.mxu0 0.0
    %1413 = vmatprep.subr.mxu0 0.0
    %1414 = vmatpush1.msra.mxu0 0.0
    %1415 = vmatprep.subr.mxu0 0.0
    %1416 = vmatpush1.msra.mxu0 0.0
    %1417 = vmatprep.subr.mxu0 0.0
    %1418 = vmatpush1.msra.mxu0 0.0
    %1419 = vmatprep.subr.mxu0 0.0
    %1420 = vmatpush1.msra.mxu0 0.0
    %1421 = vmatprep.subr.mxu0 0.0
    %1422 = vmatpush1.msra.mxu0 0.0
    %1423 = vmatprep.subr.mxu0 0.0
    %1424 = vmatpush1.msra.mxu0 0.0
    %1425 = vmatprep.subr.mxu0 0.0
    %1426 = vmatpush1.msra.mxu0 0.0
    %1427 = vmatprep.subr.mxu0 0.0
    %1428 = vmatpush1.msra.mxu0 0.0
    %1429 = vmatprep.subr.mxu0 0.0
    %1430 = vmatpush1.msra.mxu0 0.0
    %1431 = vmatprep.subr.mxu0 0.0
    %1432 = vmatpush1.msra.mxu0 0.0
    %1433 = vmatprep.subr.mxu0 0.0
    %1434 = vmatpush1.msra.mxu0 0.0
    %1435 = vmatprep.subr.mxu0 0.0
    %1436 = vmatpush1.msra.mxu0 0.0
    %1437 = vmatprep.mubr.f32.mxu0 0.0
    %1438 = vmatmul.mubr.f32.gmra.mrb[0].mxu0 %v825
    %v1439 = vpop.f32.mrb[0].mxu0
    %v1440 = vadd.f32 0.0, %v1439
    %v1441 = vpop.f32.mrb[0].mxu0
    %1442 = vmatprep.mubr.f32.mxu0 0.0
    %1443 = vmatmul.mubr.f32.gmra.mrb[0].mxu0 %v828
    %v1444 = vpop.f32.mrb[0].mxu0
    %v1445 = vadd.f32 0.0, %v1444
    %v1446 = vpop.f32.mrb[0].mxu0
    %1447 = vmatprep.mubr.f32.mxu0 0.0
    %1448 = vmatmul.mubr.f32.gmra.mrb[0].mxu0 %v831
    %v1449 = vpop.f32.mrb[0].mxu0
    %v1450 = vadd.f32 0.0, %v1449
    %v1451 = vpop.f32.mrb[0].mxu0
    %1452 = vmatprep.mubr.f32.mxu0 0.0
    %1453 = vmatmul.mubr.f32.gmra.mrb[0].mxu0 %v834
    %v1454 = vpop.f32.mrb[0].mxu0
    %v1455 = vadd.f32 0.0, %v1454
    %v1456 = vpop.f32.mrb[0].mxu0
    %1457 = vmatprep.mubr.f32.mxu0 0.0
    %1458 = vmatmul.mubr.f32.gmra.mrb[0].mxu0 %v837
    %v1459 = vpop.f32.mrb[0].mxu0
    %v1460 = vadd.f32 0.0, %v1459
    %v1461 = vpop.f32.mrb[0].mxu0
    %1462 = vmatprep.mubr.f32.mxu0 0.0
    %1463 = vmatmul.mubr.f32.gmra.mrb[0].mxu0 %v840
    %v1464 = vpop.f32.mrb[0].mxu0
    %v1465 = vadd.f32 0.0, %v1464
    %v1466 = vpop.f32.mrb[0].mxu0
    %1467 = vmatprep.mubr.f32.mxu0 0.0
    %1468 = vmatmul.mubr.f32.gmra.mrb[0].mxu0 %v843
    %v1469 = vpop.f32.mrb[0].mxu0
    %v1470 = vadd.f32 0.0, %v1469
    %v1471 = vpop.f32.mrb[0].mxu0
    %1472 = vmatprep.mubr.f32.mxu0 0.0
    %1473 = vmatmul.mubr.f32.gmra.mrb[0].mxu0 %v846
    %v1474 = vpop.f32.mrb[0].mxu0
    %v1475 = vadd.f32 0.0, %v1474
    %v1476 = vpop.f32.mrb[0].mxu0
    %1477 = vdwg.mxu0
    %1478 = vmatprep.subr.mxu0 0.0
    %1479 = vmatpush1.msra.mxu0 %v497
    %1480 = vmatprep.subr.mxu0 0.0
    %1481 = vmatpush1.msra.mxu0 %v498
    %1482 = vmatprep.subr.mxu0 0.0
    %1483 = vmatpush1.msra.mxu0 0.0
    %1484 = vmatprep.subr.mxu0 0.0
    %1485 = vmatpush1.msra.mxu0 0.0
    %1486 = vmatprep.subr.mxu0 0.0
    %1487 = vmatpush1.msra.mxu0 0.0
    %1488 = vmatprep.subr.mxu0 0.0
    %1489 = vmatpush1.msra.mxu0 0.0
    %1490 = vmatprep.subr.mxu0 0.0
    %1491 = vmatpush1.msra.mxu0 0.0
    %1492 = vmatprep.subr.mxu0 0.0
    %1493 = vmatpush1.msra.mxu0 0.0
    %1494 = vmatprep.subr.mxu0 0.0
    %1495 = vmatpush1.msra.mxu0 0.0
    %1496 = vmatprep.subr.mxu0 0.0
    %1497 = vmatpush1.msra.mxu0 0.0
    %1498 = vmatprep.subr.mxu0 0.0
    %1499 = vmatpush1.msra.mxu0 0.0
    %1500 = vmatprep.subr.mxu0 0.0
    %1501 = vmatpush1.msra.mxu0 0.0
    %1502 = vmatprep.subr.mxu0 0.0
    %1503 = vmatpush1.msra.mxu0 0.0
    %1504 = vmatprep.subr.mxu0 0.0
    %1505 = vmatpush1.msra.mxu0 0.0
    %1506 = vmatprep.subr.mxu0 0.0
    %1507 = vmatpush1.msra.mxu0 0.0
    %1508 = vmatprep.subr.mxu0 0.0
    %1509 = vmatpush1.msra.mxu0 0.0
    %1510 = vmatprep.subr.mxu0 0.0
    %1511 = vmatpush1.msra.mxu0 0.0
    %1512 = vmatprep.subr.mxu0 0.0
    %1513 = vmatpush1.msra.mxu0 0.0
    %1514 = vmatprep.subr.mxu0 0.0
    %1515 = vmatpush1.msra.mxu0 0.0
    %1516 = vmatprep.subr.mxu0 0.0
    %1517 = vmatpush1.msra.mxu0 0.0
    %1518 = vmatprep.subr.mxu0 0.0
    %1519 = vmatpush1.msra.mxu0 0.0
    %1520 = vmatprep.subr.mxu0 0.0
    %1521 = vmatpush1.msra.mxu0 0.0
    %1522 = vmatprep.subr.mxu0 0.0
    %1523 = vmatpush1.msra.mxu0 0.0
    %1524 = vmatprep.subr.mxu0 0.0
    %1525 = vmatpush1.msra.mxu0 0.0
    %1526 = vmatprep.subr.mxu0 0.0
    %1527 = vmatpush1.msra.mxu0 0.0
    %1528 = vmatprep.subr.mxu0 0.0
    %1529 = vmatpush1.msra.mxu0 0.0
    %1530 = vmatprep.subr.mxu0 0.0
    %1531 = vmatpush1.msra.mxu0 0.0
    %1532 = vmatprep.subr.mxu0 0.0
    %1533 = vmatpush1.msra.mxu0 0.0
    %1534 = vmatprep.subr.mxu0 0.0
    %1535 = vmatpush1.msra.mxu0 0.0
    %1536 = vmatprep.subr.mxu0 0.0
    %1537 = vmatpush1.msra.mxu0 0.0
    %1538 = vmatprep.subr.mxu0 0.0
    %1539 = vmatpush1.msra.mxu0 0.0
    %1540 = vmatprep.subr.mxu0 0.0
    %1541 = vmatpush1.msra.mxu0 0.0
    %1542 = vmatprep.mubr.f32.mxu0 0.0
    %1543 = vmatmul.mubr.f32.gmra.mrb[0].mxu0 %v825
    %v1544 = vpop.f32.mrb[0].mxu0
    %v1545 = vadd.f32 0.0, %v1544
    %v1546 = vpop.f32.mrb[0].mxu0
    %1547 = vmatprep.mubr.f32.mxu0 0.0
    %1548 = vmatmul.mubr.f32.gmra.mrb[0].mxu0 %v828
    %v1549 = vpop.f32.mrb[0].mxu0
    %v1550 = vadd.f32 0.0, %v1549
    %v1551 = vpop.f32.mrb[0].mxu0
    %1552 = vmatprep.mubr.f32.mxu0 0.0
    %1553 = vmatmul.mubr.f32.gmra.mrb[0].mxu0 %v831
    %v1554 = vpop.f32.mrb[0].mxu0
    %v1555 = vadd.f32 0.0, %v1554
    %v1556 = vpop.f32.mrb[0].mxu0
    %1557 = vmatprep.mubr.f32.mxu0 0.0
    %1558 = vmatmul.mubr.f32.gmra.mrb[0].mxu0 %v834
    %v1559 = vpop.f32.mrb[0].mxu0
    %v1560 = vadd.f32 0.0, %v1559
    %v1561 = vpop.f32.mrb[0].mxu0
    %1562 = vmatprep.mubr.f32.mxu0 0.0
    %1563 = vmatmul.mubr.f32.gmra.mrb[0].mxu0 %v837
    %v1564 = vpop.f32.mrb[0].mxu0
    %v1565 = vadd.f32 0.0, %v1564
    %v1566 = vpop.f32.mrb[0].mxu0
    %1567 = vmatprep.mubr.f32.mxu0 0.0
    %1568 = vmatmul.mubr.f32.gmra.mrb[0].mxu0 %v840
    %v1569 = vpop.f32.mrb[0].mxu0
    %v1570 = vadd.f32 0.0, %v1569
    %v1571 = vpop.f32.mrb[0].mxu0
    %1572 = vmatprep.mubr.f32.mxu0 0.0
    %1573 = vmatmul.mubr.f32.gmra.mrb[0].mxu0 %v843
    %v1574 = vpop.f32.mrb[0].mxu0
    %v1575 = vadd.f32 0.0, %v1574
    %v1576 = vpop.f32.mrb[0].mxu0
    %1577 = vmatprep.mubr.f32.mxu0 0.0
    %1578 = vmatmul.mubr.f32.gmra.mrb[0].mxu0 %v846
    %v1579 = vpop.f32.mrb[0].mxu0
    %v1580 = vadd.f32 0.0, %v1579
    %v1581 = vpop.f32.mrb[0].mxu0
    %1582 = vdwg.mxu0
    %1583 = vmatprep.subr.mxu0 0.0
    %1584 = vmatpush1.msra.mxu0 %v808
    %1585 = vmatprep.subr.mxu0 0.0
    %1586 = vmatpush1.msra.mxu0 %v809
    %1587 = vmatprep.subr.mxu0 0.0
    %1588 = vmatpush1.msra.mxu0 %v810
    %1589 = vmatprep.subr.mxu0 0.0
    %1590 = vmatpush1.msra.mxu0 %v811
    %1591 = vmatprep.subr.mxu0 0.0
    %1592 = vmatpush1.msra.mxu0 %v915
    %1593 = vmatprep.subr.mxu0 0.0
    %1594 = vmatpush1.msra.mxu0 %v920
    %1595 = vmatprep.subr.mxu0 0.0
    %1596 = vmatpush1.msra.mxu0 %v925
    %1597 = vmatprep.subr.mxu0 0.0
    %1598 = vmatpush1.msra.mxu0 %v930
    %1599 = vmatprep.subr.mxu0 0.0
    %1600 = vmatpush1.msra.mxu0 %v1020
    %1601 = vmatprep.subr.mxu0 0.0
    %1602 = vmatpush1.msra.mxu0 %v1025
    %1603 = vmatprep.subr.mxu0 0.0
    %1604 = vmatpush1.msra.mxu0 %v1030
    %1605 = vmatprep.subr.mxu0 0.0
    %1606 = vmatpush1.msra.mxu0 %v1035
    %1607 = vmatprep.subr.mxu0 0.0
    %1608 = vmatpush1.msra.mxu0 %v1125
    %1609 = vmatprep.subr.mxu0 0.0
    %1610 = vmatpush1.msra.mxu0 %v1130
    %1611 = vmatprep.subr.mxu0 0.0
    %1612 = vmatpush1.msra.mxu0 %v1135
    %1613 = vmatprep.subr.mxu0 0.0
    %1614 = vmatpush1.msra.mxu0 %v1140
    %1615 = vmatprep.subr.mxu0 0.0
    %1616 = vmatpush1.msra.mxu0 %v1230
    %1617 = vmatprep.subr.mxu0 0.0
    %1618 = vmatpush1.msra.mxu0 %v1235
    %1619 = vmatprep.subr.mxu0 0.0
    %1620 = vmatpush1.msra.mxu0 %v1240
    %1621 = vmatprep.subr.mxu0 0.0
    %1622 = vmatpush1.msra.mxu0 %v1245
    %1623 = vmatprep.subr.mxu0 0.0
    %1624 = vmatpush1.msra.mxu0 %v1335
    %1625 = vmatprep.subr.mxu0 0.0
    %1626 = vmatpush1.msra.mxu0 %v1340
    %1627 = vmatprep.subr.mxu0 0.0
    %1628 = vmatpush1.msra.mxu0 %v1345
    %1629 = vmatprep.subr.mxu0 0.0
    %1630 = vmatpush1.msra.mxu0 %v1350
    %1631 = vmatprep.subr.mxu0 0.0
    %1632 = vmatpush1.msra.mxu0 %v1440
    %1633 = vmatprep.subr.mxu0 0.0
    %1634 = vmatpush1.msra.mxu0 %v1445
    %1635 = vmatprep.subr.mxu0 0.0
    %1636 = vmatpush1.msra.mxu0 %v1450
    %1637 = vmatprep.subr.mxu0 0.0
    %1638 = vmatpush1.msra.mxu0 %v1455
    %1639 = vmatprep.subr.mxu0 0.0
    %1640 = vmatpush1.msra.mxu0 %v1545
    %1641 = vmatprep.subr.mxu0 0.0
    %1642 = vmatpush1.msra.mxu0 %v1550
    %1643 = vmatprep.subr.mxu0 0.0
    %1644 = vmatpush1.msra.mxu0 %v1555
    %1645 = vmatprep.subr.mxu0 0.0
    %1646 = vmatpush1.msra.mxu0 %v1560
    %1647 = vmatprep.mubr.f32.mxu0 %v817
    %1648 = vmatmul.mubr.f32.gmra.mrb[0].mxu0 %v816
    %v1649 = vpop.f32.mrb[0].mxu0
    %v1650 = vadd.f32 0.0, %v1649
    %v1651 = vpop.f32.mrb[0].mxu0
    %1652 = vmatprep.mubr.f32.mxu0 %v819
    %1653 = vmatmul.mubr.f32.gmra.mrb[0].mxu0 %v818
    %v1654 = vpop.f32.mrb[0].mxu0
    %v1655 = vadd.f32 0.0, %v1654
    %v1656 = vpop.f32.mrb[0].mxu0
    %1657 = vmatprep.mubr.f32.mxu0 %v821
    %1658 = vmatmul.mubr.f32.gmra.mrb[0].mxu0 %v820
    %v1659 = vpop.f32.mrb[0].mxu0
    %v1660 = vadd.f32 0.0, %v1659
    %v1661 = vpop.f32.mrb[0].mxu0
    %1662 = vmatprep.mubr.f32.mxu0 %v823
    %1663 = vmatmul.mubr.f32.gmra.mrb[0].mxu0 %v822
    %v1664 = vpop.f32.mrb[0].mxu0
    %v1665 = vadd.f32 0.0, %v1664
    %v1666 = vpop.f32.mrb[0].mxu0
    %1667 = vdwg.mxu0
    %1668 = vmatprep.subr.mxu0 0.0
    %1669 = vmatpush1.msra.mxu0 %v812
    %1670 = vmatprep.subr.mxu0 0.0
    %1671 = vmatpush1.msra.mxu0 %v813
    %1672 = vmatprep.subr.mxu0 0.0
    %1673 = vmatpush1.msra.mxu0 %v814
    %1674 = vmatprep.subr.mxu0 0.0
    %1675 = vmatpush1.msra.mxu0 %v815
    %1676 = vmatprep.subr.mxu0 0.0
    %1677 = vmatpush1.msra.mxu0 %v935
    %1678 = vmatprep.subr.mxu0 0.0
    %1679 = vmatpush1.msra.mxu0 %v940
    %1680 = vmatprep.subr.mxu0 0.0
    %1681 = vmatpush1.msra.mxu0 %v945
    %1682 = vmatprep.subr.mxu0 0.0
    %1683 = vmatpush1.msra.mxu0 %v950
    %1684 = vmatprep.subr.mxu0 0.0
    %1685 = vmatpush1.msra.mxu0 %v1040
    %1686 = vmatprep.subr.mxu0 0.0
    %1687 = vmatpush1.msra.mxu0 %v1045
    %1688 = vmatprep.subr.mxu0 0.0
    %1689 = vmatpush1.msra.mxu0 %v1050
    %1690 = vmatprep.subr.mxu0 0.0
    %1691 = vmatpush1.msra.mxu0 %v1055
    %1692 = vmatprep.subr.mxu0 0.0
    %1693 = vmatpush1.msra.mxu0 %v1145
    %1694 = vmatprep.subr.mxu0 0.0
    %1695 = vmatpush1.msra.mxu0 %v1150
    %1696 = vmatprep.subr.mxu0 0.0
    %1697 = vmatpush1.msra.mxu0 %v1155
    %1698 = vmatprep.subr.mxu0 0.0
    %1699 = vmatpush1.msra.mxu0 %v1160
    %1700 = vmatprep.subr.mxu0 0.0
    %1701 = vmatpush1.msra.mxu0 %v1250
    %1702 = vmatprep.subr.mxu0 0.0
    %1703 = vmatpush1.msra.mxu0 %v1255
    %1704 = vmatprep.subr.mxu0 0.0
    %1705 = vmatpush1.msra.mxu0 %v1260
    %1706 = vmatprep.subr.mxu0 0.0
    %1707 = vmatpush1.msra.mxu0 %v1265
    %1708 = vmatprep.subr.mxu0 0.0
    %1709 = vmatpush1.msra.mxu0 %v1355
    %1710 = vmatprep.subr.mxu0 0.0
    %1711 = vmatpush1.msra.mxu0 %v1360
    %1712 = vmatprep.subr.mxu0 0.0
    %1713 = vmatpush1.msra.mxu0 %v1365
    %1714 = vmatprep.subr.mxu0 0.0
    %1715 = vmatpush1.msra.mxu0 %v1370
    %1716 = vmatprep.subr.mxu0 0.0
    %1717 = vmatpush1.msra.mxu0 %v1460
    %1718 = vmatprep.subr.mxu0 0.0
    %1719 = vmatpush1.msra.mxu0 %v1465
    %1720 = vmatprep.subr.mxu0 0.0
    %1721 = vmatpush1.msra.mxu0 %v1470
    %1722 = vmatprep.subr.mxu0 0.0
    %1723 = vmatpush1.msra.mxu0 %v1475
    %1724 = vmatprep.subr.mxu0 0.0
    %1725 = vmatpush1.msra.mxu0 %v1565
    %1726 = vmatprep.subr.mxu0 0.0
    %1727 = vmatpush1.msra.mxu0 %v1570
    %1728 = vmatprep.subr.mxu0 0.0
    %1729 = vmatpush1.msra.mxu0 %v1575
    %1730 = vmatprep.subr.mxu0 0.0
    %1731 = vmatpush1.msra.mxu0 %v1580
    %1732 = vmatprep.mubr.f32.mxu0 %v817
    %1733 = vmatmul.mubr.f32.gmra.mrb[0].mxu0 %v816
    %v1734 = vpop.f32.mrb[0].mxu0
    %v1735 = vadd.f32 0.0, %v1734
    %v1736 = vpop.f32.mrb[0].mxu0
    %1737 = vmatprep.mubr.f32.mxu0 %v819
    %1738 = vmatmul.mubr.f32.gmra.mrb[0].mxu0 %v818
    %v1739 = vpop.f32.mrb[0].mxu0
    %v1740 = vadd.f32 0.0, %v1739
    %v1741 = vpop.f32.mrb[0].mxu0
    %1742 = vmatprep.mubr.f32.mxu0 %v821
    %1743 = vmatmul.mubr.f32.gmra.mrb[0].mxu0 %v820
    %v1744 = vpop.f32.mrb[0].mxu0
    %v1745 = vadd.f32 0.0, %v1744
    %v1746 = vpop.f32.mrb[0].mxu0
    %1747 = vmatprep.mubr.f32.mxu0 %v823
    %1748 = vmatmul.mubr.f32.gmra.mrb[0].mxu0 %v822
    %v1749 = vpop.f32.mrb[0].mxu0
    %v1750 = vadd.f32 0.0, %v1749
    %v1751 = vpop.f32.mrb[0].mxu0
    %1752 = vdwg.mxu0
    %v1753 = vmax.f32 %v1650, 0.0
    %v1754 = vmax.f32 %v1655, 0.0
    %v1755 = vmax.f32 %v1660, 0.0
    %v1756 = vmax.f32 %v1665, 0.0
    %v1757 = vmax.f32 %v1735, 0.0
    %v1758 = vmax.f32 %v1740, 0.0
    %v1759 = vmax.f32 %v1745, 0.0
    %v1760 = vmax.f32 %v1750, 0.0
    %v1761 = vld [vmem:[%s4] sm:$0x3]
    %v1763 = vsel %vm57, %v1753, 0
    %v1766 = vsel %vm57, %v1754, 0
    %v1769 = vsel %vm57, %v1755, 0
    %v1772 = vsel %vm57, %v1756, 0
    %v1775 = vsel %vm57, %v1757, 0
    %v1778 = vsel %vm57, %v1758, 0
    %v1781 = vsel %vm57, %v1759, 0
    %v1784 = vsel %vm57, %v1760, 0
    %1786 = vmatprep.subr.mxu0 0.0
    %1787 = vmatpush1.msra.mxu0 %v55
    %1788 = vmatprep.subr.mxu0 0.0
    %1789 = vmatpush1.msra.mxu0 %v56
    %1790 = vmatprep.subr.mxu0 0.0
    %1791 = vmatpush1.msra.mxu0 0.0
    %1792 = vmatprep.subr.mxu0 0.0
    %1793 = vmatpush1.msra.mxu0 0.0
    %1794 = vmatprep.subr.mxu0 0.0
    %1795 = vmatpush1.msra.mxu0 0.0
    %1796 = vmatprep.subr.mxu0 0.0
    %1797 = vmatpush1.msra.mxu0 0.0
    %1798 = vmatprep.subr.mxu0 0.0
    %1799 = vmatpush1.msra.mxu0 0.0
    %1800 = vmatprep.subr.mxu0 0.0
    %1801 = vmatpush1.msra.mxu0 0.0
    %1802 = vmatprep.subr.mxu0 0.0
    %1803 = vmatpush1.msra.mxu0 0.0
    %1804 = vmatprep.subr.mxu0 0.0
    %1805 = vmatpush1.msra.mxu0 0.0
    %1806 = vmatprep.subr.mxu0 0.0
    %1807 = vmatpush1.msra.mxu0 0.0
    %1808 = vmatprep.subr.mxu0 0.0
    %1809 = vmatpush1.msra.mxu0 0.0
    %1810 = vmatprep.subr.mxu0 0.0
    %1811 = vmatpush1.msra.mxu0 0.0
    %1812 = vmatprep.subr.mxu0 0.0
    %1813 = vmatpush1.msra.mxu0 0.0
    %1814 = vmatprep.subr.mxu0 0.0
    %1815 = vmatpush1.msra.mxu0 0.0
    %1816 = vmatprep.subr.mxu0 0.0
    %1817 = vmatpush1.msra.mxu0 0.0
    %1818 = vmatprep.subr.mxu0 0.0
    %1819 = vmatpush1.msra.mxu0 0.0
    %1820 = vmatprep.subr.mxu0 0.0
    %1821 = vmatpush1.msra.mxu0 0.0
    %1822 = vmatprep.subr.mxu0 0.0
    %1823 = vmatpush1.msra.mxu0 0.0
    %1824 = vmatprep.subr.mxu0 0.0
    %1825 = vmatpush1.msra.mxu0 0.0
    %1826 = vmatprep.subr.mxu0 0.0
    %1827 = vmatpush1.msra.mxu0 0.0
    %1828 = vmatprep.subr.mxu0 0.0
    %1829 = vmatpush1.msra.mxu0 0.0
    %1830 = vmatprep.subr.mxu0 0.0
    %1831 = vmatpush1.msra.mxu0 0.0
    %1832 = vmatprep.subr.mxu0 0.0
    %1833 = vmatpush1.msra.mxu0 0.0
    %1834 = vmatprep.subr.mxu0 0.0
    %1835 = vmatpush1.msra.mxu0 0.0
    %1836 = vmatprep.subr.mxu0 0.0
    %1837 = vmatpush1.msra.mxu0 0.0
    %1838 = vmatprep.subr.mxu0 0.0
    %1839 = vmatpush1.msra.mxu0 0.0
    %1840 = vmatprep.subr.mxu0 0.0
    %1841 = vmatpush1.msra.mxu0 0.0
    %1842 = vmatprep.subr.mxu0 0.0
    %1843 = vmatpush1.msra.mxu0 0.0
    %1844 = vmatprep.subr.mxu0 0.0
    %1845 = vmatpush1.msra.mxu0 0.0
    %1846 = vmatprep.subr.mxu0 0.0
    %1847 = vmatpush1.msra.mxu0 0.0
    %1848 = vmatprep.subr.mxu0 0.0
    %1849 = vmatpush1.msra.mxu0 0.0
    %1850 = vmatprep.mubr.f32.mxu0 0.0
    %1851 = vmatmul.mubr.f32.gmra.mrb[0].mxu0 %v1763
    %v1852 = vpop.f32.mrb[0].mxu0
    %v1853 = vadd.f32 0.0, %v1852
    %v1854 = vpop.f32.mrb[0].mxu0
    %1855 = vmatprep.mubr.f32.mxu0 0.0
    %1856 = vmatmul.mubr.f32.gmra.mrb[0].mxu0 %v1766
    %v1857 = vpop.f32.mrb[0].mxu0
    %v1858 = vadd.f32 0.0, %v1857
    %v1859 = vpop.f32.mrb[0].mxu0
    %1860 = vmatprep.mubr.f32.mxu0 0.0
    %1861 = vmatmul.mubr.f32.gmra.mrb[0].mxu0 %v1769
    %v1862 = vpop.f32.mrb[0].mxu0
    %v1863 = vadd.f32 0.0, %v1862
    %v1864 = vpop.f32.mrb[0].mxu0
    %1865 = vmatprep.mubr.f32.mxu0 0.0
    %1866 = vmatmul.mubr.f32.gmra.mrb[0].mxu0 %v1772
    %v1867 = vpop.f32.mrb[0].mxu0
    %v1868 = vadd.f32 0.0, %v1867
    %v1869 = vpop.f32.mrb[0].mxu0
    %1870 = vmatprep.mubr.f32.mxu0 0.0
    %1871 = vmatmul.mubr.f32.gmra.mrb[0].mxu0 %v1775
    %v1872 = vpop.f32.mrb[0].mxu0
    %v1873 = vadd.f32 0.0, %v1872
    %v1874 = vpop.f32.mrb[0].mxu0
    %1875 = vmatprep.mubr.f32.mxu0 0.0
    %1876 = vmatmul.mubr.f32.gmra.mrb[0].mxu0 %v1778
    %v1877 = vpop.f32.mrb[0].mxu0
    %v1878 = vadd.f32 0.0, %v1877
    %v1879 = vpop.f32.mrb[0].mxu0
    %1880 = vmatprep.mubr.f32.mxu0 0.0
    %1881 = vmatmul.mubr.f32.gmra.mrb[0].mxu0 %v1781
    %v1882 = vpop.f32.mrb[0].mxu0
    %v1883 = vadd.f32 0.0, %v1882
    %v1884 = vpop.f32.mrb[0].mxu0
    %1885 = vmatprep.mubr.f32.mxu0 0.0
    %1886 = vmatmul.mubr.f32.gmra.mrb[0].mxu0 %v1784
    %v1887 = vpop.f32.mrb[0].mxu0
    %v1888 = vadd.f32 0.0, %v1887
    %v1889 = vpop.f32.mrb[0].mxu0
    %1890 = vdwg.mxu0
    %1891 = vmatprep.subr.mxu0 0.0
    %1892 = vmatpush1.msra.mxu0 %v132
    %1893 = vmatprep.subr.mxu0 0.0
    %1894 = vmatpush1.msra.mxu0 %v133
    %1895 = vmatprep.subr.mxu0 0.0
    %1896 = vmatpush1.msra.mxu0 0.0
    %1897 = vmatprep.subr.mxu0 0.0
    %1898 = vmatpush1.msra.mxu0 0.0
    %1899 = vmatprep.subr.mxu0 0.0
    %1900 = vmatpush1.msra.mxu0 0.0
    %1901 = vmatprep.subr.mxu0 0.0
    %1902 = vmatpush1.msra.mxu0 0.0
    %1903 = vmatprep.subr.mxu0 0.0
    %1904 = vmatpush1.msra.mxu0 0.0
    %1905 = vmatprep.subr.mxu0 0.0
    %1906 = vmatpush1.msra.mxu0 0.0
    %1907 = vmatprep.subr.mxu0 0.0
    %1908 = vmatpush1.msra.mxu0 0.0
    %1909 = vmatprep.subr.mxu0 0.0
    %1910 = vmatpush1.msra.mxu0 0.0
    %1911 = vmatprep.subr.mxu0 0.0
    %1912 = vmatpush1.msra.mxu0 0.0
    %1913 = vmatprep.subr.mxu0 0.0
    %1914 = vmatpush1.msra.mxu0 0.0
    %1915 = vmatprep.subr.mxu0 0.0
    %1916 = vmatpush1.msra.mxu0 0.0
    %1917 = vmatprep.subr.mxu0 0.0
    %1918 = vmatpush1.msra.mxu0 0.0
    %1919 = vmatprep.subr.mxu0 0.0
    %1920 = vmatpush1.msra.mxu0 0.0
    %1921 = vmatprep.subr.mxu0 0.0
    %1922 = vmatpush1.msra.mxu0 0.0
    %1923 = vmatprep.subr.mxu0 0.0
    %1924 = vmatpush1.msra.mxu0 0.0
    %1925 = vmatprep.subr.mxu0 0.0
    %1926 = vmatpush1.msra.mxu0 0.0
    %1927 = vmatprep.subr.mxu0 0.0
    %1928 = vmatpush1.msra.mxu0 0.0
    %1929 = vmatprep.subr.mxu0 0.0
    %1930 = vmatpush1.msra.mxu0 0.0
    %1931 = vmatprep.subr.mxu0 0.0
    %1932 = vmatpush1.msra.mxu0 0.0
    %1933 = vmatprep.subr.mxu0 0.0
    %1934 = vmatpush1.msra.mxu0 0.0
    %1935 = vmatprep.subr.mxu0 0.0
    %1936 = vmatpush1.msra.mxu0 0.0
    %1937 = vmatprep.subr.mxu0 0.0
    %1938 = vmatpush1.msra.mxu0 0.0
    %1939 = vmatprep.subr.mxu0 0.0
    %1940 = vmatpush1.msra.mxu0 0.0
    %1941 = vmatprep.subr.mxu0 0.0
    %1942 = vmatpush1.msra.mxu0 0.0
    %1943 = vmatprep.subr.mxu0 0.0
    %1944 = vmatpush1.msra.mxu0 0.0
    %1945 = vmatprep.subr.mxu0 0.0
    %1946 = vmatpush1.msra.mxu0 0.0
    %1947 = vmatprep.subr.mxu0 0.0
    %1948 = vmatpush1.msra.mxu0 0.0
    %1949 = vmatprep.subr.mxu0 0.0
    %1950 = vmatpush1.msra.mxu0 0.0
    %1951 = vmatprep.subr.mxu0 0.0
    %1952 = vmatpush1.msra.mxu0 0.0
    %1953 = vmatprep.subr.mxu0 0.0
    %1954 = vmatpush1.msra.mxu0 0.0
    %1955 = vmatprep.mubr.f32.mxu0 0.0
    %1956 = vmatmul.mubr.f32.gmra.mrb[0].mxu0 %v1763
    %v1957 = vpop.f32.mrb[0].mxu0
    %v1958 = vadd.f32 0.0, %v1957
    %v1959 = vpop.f32.mrb[0].mxu0
    %1960 = vmatprep.mubr.f32.mxu0 0.0
    %1961 = vmatmul.mubr.f32.gmra.mrb[0].mxu0 %v1766
    %v1962 = vpop.f32.mrb[0].mxu0
    %v1963 = vadd.f32 0.0, %v1962
    %v1964 = vpop.f32.mrb[0].mxu0
    %1965 = vmatprep.mubr.f32.mxu0 0.0
    %1966 = vmatmul.mubr.f32.gmra.mrb[0].mxu0 %v1769
    %v1967 = vpop.f32.mrb[0].mxu0
    %v1968 = vadd.f32 0.0, %v1967
    %v1969 = vpop.f32.mrb[0].mxu0
    %1970 = vmatprep.mubr.f32.mxu0 0.0
    %1971 = vmatmul.mubr.f32.gmra.mrb[0].mxu0 %v1772
    %v1972 = vpop.f32.mrb[0].mxu0
    %v1973 = vadd.f32 0.0, %v1972
    %v1974 = vpop.f32.mrb[0].mxu0
    %1975 = vmatprep.mubr.f32.mxu0 0.0
    %1976 = vmatmul.mubr.f32.gmra.mrb[0].mxu0 %v1775
    %v1977 = vpop.f32.mrb[0].mxu0
    %v1978 = vadd.f32 0.0, %v1977
    %v1979 = vpop.f32.mrb[0].mxu0
    %1980 = vmatprep.mubr.f32.mxu0 0.0
    %1981 = vmatmul.mubr.f32.gmra.mrb[0].mxu0 %v1778
    %v1982 = vpop.f32.mrb[0].mxu0
    %v1983 = vadd.f32 0.0, %v1982
    %v1984 = vpop.f32.mrb[0].mxu0
    %1985 = vmatprep.mubr.f32.mxu0 0.0
    %1986 = vmatmul.mubr.f32.gmra.mrb[0].mxu0 %v1781
    %v1987 = vpop.f32.mrb[0].mxu0
    %v1988 = vadd.f32 0.0, %v1987
    %v1989 = vpop.f32.mrb[0].mxu0
    %1990 = vmatprep.mubr.f32.mxu0 0.0
    %1991 = vmatmul.mubr.f32.gmra.mrb[0].mxu0 %v1784
    %v1992 = vpop.f32.mrb[0].mxu0
    %v1993 = vadd.f32 0.0, %v1992
    %v1994 = vpop.f32.mrb[0].mxu0
    %1995 = vdwg.mxu0
    %1996 = vmatprep.subr.mxu0 0.0
    %1997 = vmatpush1.msra.mxu0 %v205
    %1998 = vmatprep.subr.mxu0 0.0
    %1999 = vmatpush1.msra.mxu0 %v206
    %2000 = vmatprep.subr.mxu0 0.0
    %2001 = vmatpush1.msra.mxu0 0.0
    %2002 = vmatprep.subr.mxu0 0.0
    %2003 = vmatpush1.msra.mxu0 0.0
    %2004 = vmatprep.subr.mxu0 0.0
    %2005 = vmatpush1.msra.mxu0 0.0
    %2006 = vmatprep.subr.mxu0 0.0
    %2007 = vmatpush1.msra.mxu0 0.0
    %2008 = vmatprep.subr.mxu0 0.0
    %2009 = vmatpush1.msra.mxu0 0.0
    %2010 = vmatprep.subr.mxu0 0.0
    %2011 = vmatpush1.msra.mxu0 0.0
    %2012 = vmatprep.subr.mxu0 0.0
    %2013 = vmatpush1.msra.mxu0 0.0
    %2014 = vmatprep.subr.mxu0 0.0
    %2015 = vmatpush1.msra.mxu0 0.0
    %2016 = vmatprep.subr.mxu0 0.0
    %2017 = vmatpush1.msra.mxu0 0.0
    %2018 = vmatprep.subr.mxu0 0.0
    %2019 = vmatpush1.msra.mxu0 0.0
    %2020 = vmatprep.subr.mxu0 0.0
    %2021 = vmatpush1.msra.mxu0 0.0
    %2022 = vmatprep.subr.mxu0 0.0
    %2023 = vmatpush1.msra.mxu0 0.0
    %2024 = vmatprep.subr.mxu0 0.0
    %2025 = vmatpush1.msra.mxu0 0.0
    %2026 = vmatprep.subr.mxu0 0.0
    %2027 = vmatpush1.msra.mxu0 0.0
    %2028 = vmatprep.subr.mxu0 0.0
    %2029 = vmatpush1.msra.mxu0 0.0
    %2030 = vmatprep.subr.mxu0 0.0
    %2031 = vmatpush1.msra.mxu0 0.0
    %2032 = vmatprep.subr.mxu0 0.0
    %2033 = vmatpush1.msra.mxu0 0.0
    %2034 = vmatprep.subr.mxu0 0.0
    %2035 = vmatpush1.msra.mxu0 0.0
    %2036 = vmatprep.subr.mxu0 0.0
    %2037 = vmatpush1.msra.mxu0 0.0
    %2038 = vmatprep.subr.mxu0 0.0
    %2039 = vmatpush1.msra.mxu0 0.0
    %2040 = vmatprep.subr.mxu0 0.0
    %2041 = vmatpush1.msra.mxu0 0.0
    %2042 = vmatprep.subr.mxu0 0.0
    %2043 = vmatpush1.msra.mxu0 0.0
    %2044 = vmatprep.subr.mxu0 0.0
    %2045 = vmatpush1.msra.mxu0 0.0
    %2046 = vmatprep.subr.mxu0 0.0
    %2047 = vmatpush1.msra.mxu0 0.0
    %2048 = vmatprep.subr.mxu0 0.0
    %2049 = vmatpush1.msra.mxu0 0.0
    %2050 = vmatprep.subr.mxu0 0.0
    %2051 = vmatpush1.msra.mxu0 0.0
    %2052 = vmatprep.subr.mxu0 0.0
    %2053 = vmatpush1.msra.mxu0 0.0
    %2054 = vmatprep.subr.mxu0 0.0
    %2055 = vmatpush1.msra.mxu0 0.0
    %2056 = vmatprep.subr.mxu0 0.0
    %2057 = vmatpush1.msra.mxu0 0.0
    %2058 = vmatprep.subr.mxu0 0.0
    %2059 = vmatpush1.msra.mxu0 0.0
    %2060 = vmatprep.mubr.f32.mxu0 0.0
    %2061 = vmatmul.mubr.f32.gmra.mrb[0].mxu0 %v1763
    %v2062 = vpop.f32.mrb[0].mxu0
    %v2063 = vadd.f32 0.0, %v2062
    %v2064 = vpop.f32.mrb[0].mxu0
    %2065 = vmatprep.mubr.f32.mxu0 0.0
    %2066 = vmatmul.mubr.f32.gmra.mrb[0].mxu0 %v1766
    %v2067 = vpop.f32.mrb[0].mxu0
    %v2068 = vadd.f32 0.0, %v2067
    %v2069 = vpop.f32.mrb[0].mxu0
    %2070 = vmatprep.mubr.f32.mxu0 0.0
    %2071 = vmatmul.mubr.f32.gmra.mrb[0].mxu0 %v1769
    %v2072 = vpop.f32.mrb[0].mxu0
    %v2073 = vadd.f32 0.0, %v2072
    %v2074 = vpop.f32.mrb[0].mxu0
    %2075 = vmatprep.mubr.f32.mxu0 0.0
    %2076 = vmatmul.mubr.f32.gmra.mrb[0].mxu0 %v1772
    %v2077 = vpop.f32.mrb[0].mxu0
    %v2078 = vadd.f32 0.0, %v2077
    %v2079 = vpop.f32.mrb[0].mxu0
    %2080 = vmatprep.mubr.f32.mxu0 0.0
    %2081 = vmatmul.mubr.f32.gmra.mrb[0].mxu0 %v1775
    %v2082 = vpop.f32.mrb[0].mxu0
    %v2083 = vadd.f32 0.0, %v2082
    %v2084 = vpop.f32.mrb[0].mxu0
    %2085 = vmatprep.mubr.f32.mxu0 0.0
    %2086 = vmatmul.mubr.f32.gmra.mrb[0].mxu0 %v1778
    %v2087 = vpop.f32.mrb[0].mxu0
    %v2088 = vadd.f32 0.0, %v2087
    %v2089 = vpop.f32.mrb[0].mxu0
    %2090 = vmatprep.mubr.f32.mxu0 0.0
    %2091 = vmatmul.mubr.f32.gmra.mrb[0].mxu0 %v1781
    %v2092 = vpop.f32.mrb[0].mxu0
    %v2093 = vadd.f32 0.0, %v2092
    %v2094 = vpop.f32.mrb[0].mxu0
    %2095 = vmatprep.mubr.f32.mxu0 0.0
    %2096 = vmatmul.mubr.f32.gmra.mrb[0].mxu0 %v1784
    %v2097 = vpop.f32.mrb[0].mxu0
    %v2098 = vadd.f32 0.0, %v2097
    %v2099 = vpop.f32.mrb[0].mxu0
    %2100 = vdwg.mxu0
    %2101 = vmatprep.subr.mxu0 0.0
    %2102 = vmatpush1.msra.mxu0 %v278
    %2103 = vmatprep.subr.mxu0 0.0
    %2104 = vmatpush1.msra.mxu0 %v279
    %2105 = vmatprep.subr.mxu0 0.0
    %2106 = vmatpush1.msra.mxu0 0.0
    %2107 = vmatprep.subr.mxu0 0.0
    %2108 = vmatpush1.msra.mxu0 0.0
    %2109 = vmatprep.subr.mxu0 0.0
    %2110 = vmatpush1.msra.mxu0 0.0
    %2111 = vmatprep.subr.mxu0 0.0
    %2112 = vmatpush1.msra.mxu0 0.0
    %2113 = vmatprep.subr.mxu0 0.0
    %2114 = vmatpush1.msra.mxu0 0.0
    %2115 = vmatprep.subr.mxu0 0.0
    %2116 = vmatpush1.msra.mxu0 0.0
    %2117 = vmatprep.subr.mxu0 0.0
    %2118 = vmatpush1.msra.mxu0 0.0
    %2119 = vmatprep.subr.mxu0 0.0
    %2120 = vmatpush1.msra.mxu0 0.0
    %2121 = vmatprep.subr.mxu0 0.0
    %2122 = vmatpush1.msra.mxu0 0.0
    %2123 = vmatprep.subr.mxu0 0.0
    %2124 = vmatpush1.msra.mxu0 0.0
    %2125 = vmatprep.subr.mxu0 0.0
    %2126 = vmatpush1.msra.mxu0 0.0
    %2127 = vmatprep.subr.mxu0 0.0
    %2128 = vmatpush1.msra.mxu0 0.0
    %2129 = vmatprep.subr.mxu0 0.0
    %2130 = vmatpush1.msra.mxu0 0.0
    %2131 = vmatprep.subr.mxu0 0.0
    %2132 = vmatpush1.msra.mxu0 0.0
    %2133 = vmatprep.subr.mxu0 0.0
    %2134 = vmatpush1.msra.mxu0 0.0
    %2135 = vmatprep.subr.mxu0 0.0
    %2136 = vmatpush1.msra.mxu0 0.0
    %2137 = vmatprep.subr.mxu0 0.0
    %2138 = vmatpush1.msra.mxu0 0.0
    %2139 = vmatprep.subr.mxu0 0.0
    %2140 = vmatpush1.msra.mxu0 0.0
    %2141 = vmatprep.subr.mxu0 0.0
    %2142 = vmatpush1.msra.mxu0 0.0
    %2143 = vmatprep.subr.mxu0 0.0
    %2144 = vmatpush1.msra.mxu0 0.0
    %2145 = vmatprep.subr.mxu0 0.0
    %2146 = vmatpush1.msra.mxu0 0.0
    %2147 = vmatprep.subr.mxu0 0.0
    %2148 = vmatpush1.msra.mxu0 0.0
    %2149 = vmatprep.subr.mxu0 0.0
    %2150 = vmatpush1.msra.mxu0 0.0
    %2151 = vmatprep.subr.mxu0 0.0
    %2152 = vmatpush1.msra.mxu0 0.0
    %2153 = vmatprep.subr.mxu0 0.0
    %2154 = vmatpush1.msra.mxu0 0.0
    %2155 = vmatprep.subr.mxu0 0.0
    %2156 = vmatpush1.msra.mxu0 0.0
    %2157 = vmatprep.subr.mxu0 0.0
    %2158 = vmatpush1.msra.mxu0 0.0
    %2159 = vmatprep.subr.mxu0 0.0
    %2160 = vmatpush1.msra.mxu0 0.0
    %2161 = vmatprep.subr.mxu0 0.0
    %2162 = vmatpush1.msra.mxu0 0.0
    %2163 = vmatprep.subr.mxu0 0.0
    %2164 = vmatpush1.msra.mxu0 0.0
    %2165 = vmatprep.mubr.f32.mxu0 0.0
    %2166 = vmatmul.mubr.f32.gmra.mrb[0].mxu0 %v1763
    %v2167 = vpop.f32.mrb[0].mxu0
    %v2168 = vadd.f32 0.0, %v2167
    %v2169 = vpop.f32.mrb[0].mxu0
    %2170 = vmatprep.mubr.f32.mxu0 0.0
    %2171 = vmatmul.mubr.f32.gmra.mrb[0].mxu0 %v1766
    %v2172 = vpop.f32.mrb[0].mxu0
    %v2173 = vadd.f32 0.0, %v2172
    %v2174 = vpop.f32.mrb[0].mxu0
    %2175 = vmatprep.mubr.f32.mxu0 0.0
    %2176 = vmatmul.mubr.f32.gmra.mrb[0].mxu0 %v1769
    %v2177 = vpop.f32.mrb[0].mxu0
    %v2178 = vadd.f32 0.0, %v2177
    %v2179 = vpop.f32.mrb[0].mxu0
    %2180 = vmatprep.mubr.f32.mxu0 0.0
    %2181 = vmatmul.mubr.f32.gmra.mrb[0].mxu0 %v1772
    %v2182 = vpop.f32.mrb[0].mxu0
    %v2183 = vadd.f32 0.0, %v2182
    %v2184 = vpop.f32.mrb[0].mxu0
    %2185 = vmatprep.mubr.f32.mxu0 0.0
    %2186 = vmatmul.mubr.f32.gmra.mrb[0].mxu0 %v1775
    %v2187 = vpop.f32.mrb[0].mxu0
    %v2188 = vadd.f32 0.0, %v2187
    %v2189 = vpop.f32.mrb[0].mxu0
    %2190 = vmatprep.mubr.f32.mxu0 0.0
    %2191 = vmatmul.mubr.f32.gmra.mrb[0].mxu0 %v1778
    %v2192 = vpop.f32.mrb[0].mxu0
    %v2193 = vadd.f32 0.0, %v2192
    %v2194 = vpop.f32.mrb[0].mxu0
    %2195 = vmatprep.mubr.f32.mxu0 0.0
    %2196 = vmatmul.mubr.f32.gmra.mrb[0].mxu0 %v1781
    %v2197 = vpop.f32.mrb[0].mxu0
    %v2198 = vadd.f32 0.0, %v2197
    %v2199 = vpop.f32.mrb[0].mxu0
    %2200 = vmatprep.mubr.f32.mxu0 0.0
    %2201 = vmatmul.mubr.f32.gmra.mrb[0].mxu0 %v1784
    %v2202 = vpop.f32.mrb[0].mxu0
    %v2203 = vadd.f32 0.0, %v2202
    %v2204 = vpop.f32.mrb[0].mxu0
    %2205 = vdwg.mxu0
    %2206 = vmatprep.subr.mxu0 0.0
    %2207 = vmatpush1.msra.mxu0 %v351
    %2208 = vmatprep.subr.mxu0 0.0
    %2209 = vmatpush1.msra.mxu0 %v352
    %2210 = vmatprep.subr.mxu0 0.0
    %2211 = vmatpush1.msra.mxu0 0.0
    %2212 = vmatprep.subr.mxu0 0.0
    %2213 = vmatpush1.msra.mxu0 0.0
    %2214 = vmatprep.subr.mxu0 0.0
    %2215 = vmatpush1.msra.mxu0 0.0
    %2216 = vmatprep.subr.mxu0 0.0
    %2217 = vmatpush1.msra.mxu0 0.0
    %2218 = vmatprep.subr.mxu0 0.0
    %2219 = vmatpush1.msra.mxu0 0.0
    %2220 = vmatprep.subr.mxu0 0.0
    %2221 = vmatpush1.msra.mxu0 0.0
    %2222 = vmatprep.subr.mxu0 0.0
    %2223 = vmatpush1.msra.mxu0 0.0
    %2224 = vmatprep.subr.mxu0 0.0
    %2225 = vmatpush1.msra.mxu0 0.0
    %2226 = vmatprep.subr.mxu0 0.0
    %2227 = vmatpush1.msra.mxu0 0.0
    %2228 = vmatprep.subr.mxu0 0.0
    %2229 = vmatpush1.msra.mxu0 0.0
    %2230 = vmatprep.subr.mxu0 0.0
    %2231 = vmatpush1.msra.mxu0 0.0
    %2232 = vmatprep.subr.mxu0 0.0
    %2233 = vmatpush1.msra.mxu0 0.0
    %2234 = vmatprep.subr.mxu0 0.0
    %2235 = vmatpush1.msra.mxu0 0.0
    %2236 = vmatprep.subr.mxu0 0.0
    %2237 = vmatpush1.msra.mxu0 0.0
    %2238 = vmatprep.subr.mxu0 0.0
    %2239 = vmatpush1.msra.mxu0 0.0
    %2240 = vmatprep.subr.mxu0 0.0
    %2241 = vmatpush1.msra.mxu0 0.0
    %2242 = vmatprep.subr.mxu0 0.0
    %2243 = vmatpush1.msra.mxu0 0.0
    %2244 = vmatprep.subr.mxu0 0.0
    %2245 = vmatpush1.msra.mxu0 0.0
    %2246 = vmatprep.subr.mxu0 0.0
    %2247 = vmatpush1.msra.mxu0 0.0
    %2248 = vmatprep.subr.mxu0 0.0
    %2249 = vmatpush1.msra.mxu0 0.0
    %2250 = vmatprep.subr.mxu0 0.0
    %2251 = vmatpush1.msra.mxu0 0.0
    %2252 = vmatprep.subr.mxu0 0.0
    %2253 = vmatpush1.msra.mxu0 0.0
    %2254 = vmatprep.subr.mxu0 0.0
    %2255 = vmatpush1.msra.mxu0 0.0
    %2256 = vmatprep.subr.mxu0 0.0
    %2257 = vmatpush1.msra.mxu0 0.0
    %2258 = vmatprep.subr.mxu0 0.0
    %2259 = vmatpush1.msra.mxu0 0.0
    %2260 = vmatprep.subr.mxu0 0.0
    %2261 = vmatpush1.msra.mxu0 0.0
    %2262 = vmatprep.subr.mxu0 0.0
    %2263 = vmatpush1.msra.mxu0 0.0
    %2264 = vmatprep.subr.mxu0 0.0
    %2265 = vmatpush1.msra.mxu0 0.0
    %2266 = vmatprep.subr.mxu0 0.0
    %2267 = vmatpush1.msra.mxu0 0.0
    %2268 = vmatprep.subr.mxu0 0.0
    %2269 = vmatpush1.msra.mxu0 0.0
    %2270 = vmatprep.mubr.f32.mxu0 0.0
    %2271 = vmatmul.mubr.f32.gmra.mrb[0].mxu0 %v1763
    %v2272 = vpop.f32.mrb[0].mxu0
    %v2273 = vadd.f32 0.0, %v2272
    %v2274 = vpop.f32.mrb[0].mxu0
    %2275 = vmatprep.mubr.f32.mxu0 0.0
    %2276 = vmatmul.mubr.f32.gmra.mrb[0].mxu0 %v1766
    %v2277 = vpop.f32.mrb[0].mxu0
    %v2278 = vadd.f32 0.0, %v2277
    %v2279 = vpop.f32.mrb[0].mxu0
    %2280 = vmatprep.mubr.f32.mxu0 0.0
    %2281 = vmatmul.mubr.f32.gmra.mrb[0].mxu0 %v1769
    %v2282 = vpop.f32.mrb[0].mxu0
    %v2283 = vadd.f32 0.0, %v2282
    %v2284 = vpop.f32.mrb[0].mxu0
    %2285 = vmatprep.mubr.f32.mxu0 0.0
    %2286 = vmatmul.mubr.f32.gmra.mrb[0].mxu0 %v1772
    %v2287 = vpop.f32.mrb[0].mxu0
    %v2288 = vadd.f32 0.0, %v2287
    %v2289 = vpop.f32.mrb[0].mxu0
    %2290 = vmatprep.mubr.f32.mxu0 0.0
    %2291 = vmatmul.mubr.f32.gmra.mrb[0].mxu0 %v1775
    %v2292 = vpop.f32.mrb[0].mxu0
    %v2293 = vadd.f32 0.0, %v2292
    %v2294 = vpop.f32.mrb[0].mxu0
    %2295 = vmatprep.mubr.f32.mxu0 0.0
    %2296 = vmatmul.mubr.f32.gmra.mrb[0].mxu0 %v1778
    %v2297 = vpop.f32.mrb[0].mxu0
    %v2298 = vadd.f32 0.0, %v2297
    %v2299 = vpop.f32.mrb[0].mxu0
    %2300 = vmatprep.mubr.f32.mxu0 0.0
    %2301 = vmatmul.mubr.f32.gmra.mrb[0].mxu0 %v1781
    %v2302 = vpop.f32.mrb[0].mxu0
    %v2303 = vadd.f32 0.0, %v2302
    %v2304 = vpop.f32.mrb[0].mxu0
    %2305 = vmatprep.mubr.f32.mxu0 0.0
    %2306 = vmatmul.mubr.f32.gmra.mrb[0].mxu0 %v1784
    %v2307 = vpop.f32.mrb[0].mxu0
    %v2308 = vadd.f32 0.0, %v2307
    %v2309 = vpop.f32.mrb[0].mxu0
    %2310 = vdwg.mxu0
    %2311 = vmatprep.subr.mxu0 0.0
    %2312 = vmatpush1.msra.mxu0 %v424
    %2313 = vmatprep.subr.mxu0 0.0
    %2314 = vmatpush1.msra.mxu0 %v425
    %2315 = vmatprep.subr.mxu0 0.0
    %2316 = vmatpush1.msra.mxu0 0.0
    %2317 = vmatprep.subr.mxu0 0.0
    %2318 = vmatpush1.msra.mxu0 0.0
    %2319 = vmatprep.subr.mxu0 0.0
    %2320 = vmatpush1.msra.mxu0 0.0
    %2321 = vmatprep.subr.mxu0 0.0
    %2322 = vmatpush1.msra.mxu0 0.0
    %2323 = vmatprep.subr.mxu0 0.0
    %2324 = vmatpush1.msra.mxu0 0.0
    %2325 = vmatprep.subr.mxu0 0.0
    %2326 = vmatpush1.msra.mxu0 0.0
    %2327 = vmatprep.subr.mxu0 0.0
    %2328 = vmatpush1.msra.mxu0 0.0
    %2329 = vmatprep.subr.mxu0 0.0
    %2330 = vmatpush1.msra.mxu0 0.0
    %2331 = vmatprep.subr.mxu0 0.0
    %2332 = vmatpush1.msra.mxu0 0.0
    %2333 = vmatprep.subr.mxu0 0.0
    %2334 = vmatpush1.msra.mxu0 0.0
    %2335 = vmatprep.subr.mxu0 0.0
    %2336 = vmatpush1.msra.mxu0 0.0
    %2337 = vmatprep.subr.mxu0 0.0
    %2338 = vmatpush1.msra.mxu0 0.0
    %2339 = vmatprep.subr.mxu0 0.0
    %2340 = vmatpush1.msra.mxu0 0.0
    %2341 = vmatprep.subr.mxu0 0.0
    %2342 = vmatpush1.msra.mxu0 0.0
    %2343 = vmatprep.subr.mxu0 0.0
    %2344 = vmatpush1.msra.mxu0 0.0
    %2345 = vmatprep.subr.mxu0 0.0
    %2346 = vmatpush1.msra.mxu0 0.0
    %2347 = vmatprep.subr.mxu0 0.0
    %2348 = vmatpush1.msra.mxu0 0.0
    %2349 = vmatprep.subr.mxu0 0.0
    %2350 = vmatpush1.msra.mxu0 0.0
    %2351 = vmatprep.subr.mxu0 0.0
    %2352 = vmatpush1.msra.mxu0 0.0
    %2353 = vmatprep.subr.mxu0 0.0
    %2354 = vmatpush1.msra.mxu0 0.0
    %2355 = vmatprep.subr.mxu0 0.0
    %2356 = vmatpush1.msra.mxu0 0.0
    %2357 = vmatprep.subr.mxu0 0.0
    %2358 = vmatpush1.msra.mxu0 0.0
    %2359 = vmatprep.subr.mxu0 0.0
    %2360 = vmatpush1.msra.mxu0 0.0
    %2361 = vmatprep.subr.mxu0 0.0
    %2362 = vmatpush1.msra.mxu0 0.0
    %2363 = vmatprep.subr.mxu0 0.0
    %2364 = vmatpush1.msra.mxu0 0.0
    %2365 = vmatprep.subr.mxu0 0.0
    %2366 = vmatpush1.msra.mxu0 0.0
    %2367 = vmatprep.subr.mxu0 0.0
    %2368 = vmatpush1.msra.mxu0 0.0
    %2369 = vmatprep.subr.mxu0 0.0
    %2370 = vmatpush1.msra.mxu0 0.0
    %2371 = vmatprep.subr.mxu0 0.0
    %2372 = vmatpush1.msra.mxu0 0.0
    %2373 = vmatprep.subr.mxu0 0.0
    %2374 = vmatpush1.msra.mxu0 0.0
    %2375 = vmatprep.mubr.f32.mxu0 0.0
    %2376 = vmatmul.mubr.f32.gmra.mrb[0].mxu0 %v1763
    %v2377 = vpop.f32.mrb[0].mxu0
    %v2378 = vadd.f32 0.0, %v2377
    %v2379 = vpop.f32.mrb[0].mxu0
    %2380 = vmatprep.mubr.f32.mxu0 0.0
    %2381 = vmatmul.mubr.f32.gmra.mrb[0].mxu0 %v1766
    %v2382 = vpop.f32.mrb[0].mxu0
    %v2383 = vadd.f32 0.0, %v2382
    %v2384 = vpop.f32.mrb[0].mxu0
    %2385 = vmatprep.mubr.f32.mxu0 0.0
    %2386 = vmatmul.mubr.f32.gmra.mrb[0].mxu0 %v1769
    %v2387 = vpop.f32.mrb[0].mxu0
    %v2388 = vadd.f32 0.0, %v2387
    %v2389 = vpop.f32.mrb[0].mxu0
    %2390 = vmatprep.mubr.f32.mxu0 0.0
    %2391 = vmatmul.mubr.f32.gmra.mrb[0].mxu0 %v1772
    %v2392 = vpop.f32.mrb[0].mxu0
    %v2393 = vadd.f32 0.0, %v2392
    %v2394 = vpop.f32.mrb[0].mxu0
    %2395 = vmatprep.mubr.f32.mxu0 0.0
    %2396 = vmatmul.mubr.f32.gmra.mrb[0].mxu0 %v1775
    %v2397 = vpop.f32.mrb[0].mxu0
    %v2398 = vadd.f32 0.0, %v2397
    %v2399 = vpop.f32.mrb[0].mxu0
    %2400 = vmatprep.mubr.f32.mxu0 0.0
    %2401 = vmatmul.mubr.f32.gmra.mrb[0].mxu0 %v1778
    %v2402 = vpop.f32.mrb[0].mxu0
    %v2403 = vadd.f32 0.0, %v2402
    %v2404 = vpop.f32.mrb[0].mxu0
    %2405 = vmatprep.mubr.f32.mxu0 0.0
    %2406 = vmatmul.mubr.f32.gmra.mrb[0].mxu0 %v1781
    %v2407 = vpop.f32.mrb[0].mxu0
    %v2408 = vadd.f32 0.0, %v2407
    %v2409 = vpop.f32.mrb[0].mxu0
    %2410 = vmatprep.mubr.f32.mxu0 0.0
    %2411 = vmatmul.mubr.f32.gmra.mrb[0].mxu0 %v1784
    %v2412 = vpop.f32.mrb[0].mxu0
    %v2413 = vadd.f32 0.0, %v2412
    %v2414 = vpop.f32.mrb[0].mxu0
    %2415 = vdwg.mxu0
    %2416 = vmatprep.subr.mxu0 0.0
    %2417 = vmatpush1.msra.mxu0 %v497
    %2418 = vmatprep.subr.mxu0 0.0
    %2419 = vmatpush1.msra.mxu0 %v498
    %2420 = vmatprep.subr.mxu0 0.0
    %2421 = vmatpush1.msra.mxu0 0.0
    %2422 = vmatprep.subr.mxu0 0.0
    %2423 = vmatpush1.msra.mxu0 0.0
    %2424 = vmatprep.subr.mxu0 0.0
    %2425 = vmatpush1.msra.mxu0 0.0
    %2426 = vmatprep.subr.mxu0 0.0
    %2427 = vmatpush1.msra.mxu0 0.0
    %2428 = vmatprep.subr.mxu0 0.0
    %2429 = vmatpush1.msra.mxu0 0.0
    %2430 = vmatprep.subr.mxu0 0.0
    %2431 = vmatpush1.msra.mxu0 0.0
    %2432 = vmatprep.subr.mxu0 0.0
    %2433 = vmatpush1.msra.mxu0 0.0
    %2434 = vmatprep.subr.mxu0 0.0
    %2435 = vmatpush1.msra.mxu0 0.0
    %2436 = vmatprep.subr.mxu0 0.0
    %2437 = vmatpush1.msra.mxu0 0.0
    %2438 = vmatprep.subr.mxu0 0.0
    %2439 = vmatpush1.msra.mxu0 0.0
    %2440 = vmatprep.subr.mxu0 0.0
    %2441 = vmatpush1.msra.mxu0 0.0
    %2442 = vmatprep.subr.mxu0 0.0
    %2443 = vmatpush1.msra.mxu0 0.0
    %2444 = vmatprep.subr.mxu0 0.0
    %2445 = vmatpush1.msra.mxu0 0.0
    %2446 = vmatprep.subr.mxu0 0.0
    %2447 = vmatpush1.msra.mxu0 0.0
    %2448 = vmatprep.subr.mxu0 0.0
    %2449 = vmatpush1.msra.mxu0 0.0
    %2450 = vmatprep.subr.mxu0 0.0
    %2451 = vmatpush1.msra.mxu0 0.0
    %2452 = vmatprep.subr.mxu0 0.0
    %2453 = vmatpush1.msra.mxu0 0.0
    %2454 = vmatprep.subr.mxu0 0.0
    %2455 = vmatpush1.msra.mxu0 0.0
    %2456 = vmatprep.subr.mxu0 0.0
    %2457 = vmatpush1.msra.mxu0 0.0
    %2458 = vmatprep.subr.mxu0 0.0
    %2459 = vmatpush1.msra.mxu0 0.0
    %2460 = vmatprep.subr.mxu0 0.0
    %2461 = vmatpush1.msra.mxu0 0.0
    %2462 = vmatprep.subr.mxu0 0.0
    %2463 = vmatpush1.msra.mxu0 0.0
    %2464 = vmatprep.subr.mxu0 0.0
    %2465 = vmatpush1.msra.mxu0 0.0
    %2466 = vmatprep.subr.mxu0 0.0
    %2467 = vmatpush1.msra.mxu0 0.0
    %2468 = vmatprep.subr.mxu0 0.0
    %2469 = vmatpush1.msra.mxu0 0.0
    %2470 = vmatprep.subr.mxu0 0.0
    %2471 = vmatpush1.msra.mxu0 0.0
    %2472 = vmatprep.subr.mxu0 0.0
    %2473 = vmatpush1.msra.mxu0 0.0
    %2474 = vmatprep.subr.mxu0 0.0
    %2475 = vmatpush1.msra.mxu0 0.0
    %2476 = vmatprep.subr.mxu0 0.0
    %2477 = vmatpush1.msra.mxu0 0.0
    %2478 = vmatprep.subr.mxu0 0.0
    %2479 = vmatpush1.msra.mxu0 0.0
    %2480 = vmatprep.mubr.f32.mxu0 0.0
    %2481 = vmatmul.mubr.f32.gmra.mrb[0].mxu0 %v1763
    %v2482 = vpop.f32.mrb[0].mxu0
    %v2483 = vadd.f32 0.0, %v2482
    %v2484 = vpop.f32.mrb[0].mxu0
    %2485 = vmatprep.mubr.f32.mxu0 0.0
    %2486 = vmatmul.mubr.f32.gmra.mrb[0].mxu0 %v1766
    %v2487 = vpop.f32.mrb[0].mxu0
    %v2488 = vadd.f32 0.0, %v2487
    %v2489 = vpop.f32.mrb[0].mxu0
    %2490 = vmatprep.mubr.f32.mxu0 0.0
    %2491 = vmatmul.mubr.f32.gmra.mrb[0].mxu0 %v1769
    %v2492 = vpop.f32.mrb[0].mxu0
    %v2493 = vadd.f32 0.0, %v2492
    %v2494 = vpop.f32.mrb[0].mxu0
    %2495 = vmatprep.mubr.f32.mxu0 0.0
    %2496 = vmatmul.mubr.f32.gmra.mrb[0].mxu0 %v1772
    %v2497 = vpop.f32.mrb[0].mxu0
    %v2498 = vadd.f32 0.0, %v2497
    %v2499 = vpop.f32.mrb[0].mxu0
    %2500 = vmatprep.mubr.f32.mxu0 0.0
    %2501 = vmatmul.mubr.f32.gmra.mrb[0].mxu0 %v1775
    %v2502 = vpop.f32.mrb[0].mxu0
    %v2503 = vadd.f32 0.0, %v2502
    %v2504 = vpop.f32.mrb[0].mxu0
    %2505 = vmatprep.mubr.f32.mxu0 0.0
    %2506 = vmatmul.mubr.f32.gmra.mrb[0].mxu0 %v1778
    %v2507 = vpop.f32.mrb[0].mxu0
    %v2508 = vadd.f32 0.0, %v2507
    %v2509 = vpop.f32.mrb[0].mxu0
    %2510 = vmatprep.mubr.f32.mxu0 0.0
    %2511 = vmatmul.mubr.f32.gmra.mrb[0].mxu0 %v1781
    %v2512 = vpop.f32.mrb[0].mxu0
    %v2513 = vadd.f32 0.0, %v2512
    %v2514 = vpop.f32.mrb[0].mxu0
    %2515 = vmatprep.mubr.f32.mxu0 0.0
    %2516 = vmatmul.mubr.f32.gmra.mrb[0].mxu0 %v1784
    %v2517 = vpop.f32.mrb[0].mxu0
    %v2518 = vadd.f32 0.0, %v2517
    %v2519 = vpop.f32.mrb[0].mxu0
    %2520 = vdwg.mxu0
    %v2522 = vlaneseq
    %v2523 = vshrl.u32 %v2522, 7
    %v2524 = vsub.s32 0, %v2523
    %v2525 = vrot.slane %v1761, %v2524
    %v2526 = vlaneseq
    %v2527 = vshrl.u32 %v2526, 7
    %v2528 = vsub.s32 1, %v2527
    %v2529 = vrot.slane %v1761, %v2528
    %2532 = vmatprep.subr.mxu0 0.0
    %2533 = vmatpush1.msra.mxu0 %v1753
    %2534 = vmatprep.subr.mxu0 0.0
    %2535 = vmatpush1.msra.mxu0 %v1754
    %2536 = vmatprep.subr.mxu0 0.0
    %2537 = vmatpush1.msra.mxu0 %v1755
    %2538 = vmatprep.subr.mxu0 0.0
    %2539 = vmatpush1.msra.mxu0 %v1756
    %2540 = vmatprep.subr.mxu0 0.0
    %2541 = vmatpush1.msra.mxu0 %v1853
    %2542 = vmatprep.subr.mxu0 0.0
    %2543 = vmatpush1.msra.mxu0 %v1858
    %2544 = vmatprep.subr.mxu0 0.0
    %2545 = vmatpush1.msra.mxu0 %v1863
    %2546 = vmatprep.subr.mxu0 0.0
    %2547 = vmatpush1.msra.mxu0 %v1868
    %2548 = vmatprep.subr.mxu0 0.0
    %2549 = vmatpush1.msra.mxu0 %v1958
    %2550 = vmatprep.subr.mxu0 0.0
    %2551 = vmatpush1.msra.mxu0 %v1963
    %2552 = vmatprep.subr.mxu0 0.0
    %2553 = vmatpush1.msra.mxu0 %v1968
    %2554 = vmatprep.subr.mxu0 0.0
    %2555 = vmatpush1.msra.mxu0 %v1973
    %2556 = vmatprep.subr.mxu0 0.0
    %2557 = vmatpush1.msra.mxu0 %v2063
    %2558 = vmatprep.subr.mxu0 0.0
    %2559 = vmatpush1.msra.mxu0 %v2068
    %2560 = vmatprep.subr.mxu0 0.0
    %2561 = vmatpush1.msra.mxu0 %v2073
    %2562 = vmatprep.subr.mxu0 0.0
    %2563 = vmatpush1.msra.mxu0 %v2078
    %2564 = vmatprep.subr.mxu0 0.0
    %2565 = vmatpush1.msra.mxu0 %v2168
    %2566 = vmatprep.subr.mxu0 0.0
    %2567 = vmatpush1.msra.mxu0 %v2173
    %2568 = vmatprep.subr.mxu0 0.0
    %2569 = vmatpush1.msra.mxu0 %v2178
    %2570 = vmatprep.subr.mxu0 0.0
    %2571 = vmatpush1.msra.mxu0 %v2183
    %2572 = vmatprep.subr.mxu0 0.0
    %2573 = vmatpush1.msra.mxu0 %v2273
    %2574 = vmatprep.subr.mxu0 0.0
    %2575 = vmatpush1.msra.mxu0 %v2278
    %2576 = vmatprep.subr.mxu0 0.0
    %2577 = vmatpush1.msra.mxu0 %v2283
    %2578 = vmatprep.subr.mxu0 0.0
    %2579 = vmatpush1.msra.mxu0 %v2288
    %2580 = vmatprep.subr.mxu0 0.0
    %2581 = vmatpush1.msra.mxu0 %v2378
    %2582 = vmatprep.subr.mxu0 0.0
    %2583 = vmatpush1.msra.mxu0 %v2383
    %2584 = vmatprep.subr.mxu0 0.0
    %2585 = vmatpush1.msra.mxu0 %v2388
    %2586 = vmatprep.subr.mxu0 0.0
    %2587 = vmatpush1.msra.mxu0 %v2393
    %2588 = vmatprep.subr.mxu0 0.0
    %2589 = vmatpush1.msra.mxu0 %v2483
    %2590 = vmatprep.subr.mxu0 0.0
    %2591 = vmatpush1.msra.mxu0 %v2488
    %2592 = vmatprep.subr.mxu0 0.0
    %2593 = vmatpush1.msra.mxu0 %v2493
    %2594 = vmatprep.subr.mxu0 0.0
    %2595 = vmatpush1.msra.mxu0 %v2498
    %2596 = vmatprep.mubr.f32.mxu0 %v2529
    %2597 = vmatmul.mubr.f32.gmra.mrb[0].mxu0 %v2525
    %v2598 = vpop.f32.mrb[0].mxu0
    %v2599 = vadd.f32 0.0, %v2598
    %v2600 = vpop.f32.mrb[0].mxu0
    %2601 = vdwg.mxu0
    %2602 = vmatprep.subr.mxu0 0.0
    %2603 = vmatpush1.msra.mxu0 %v1757
    %2604 = vmatprep.subr.mxu0 0.0
    %2605 = vmatpush1.msra.mxu0 %v1758
    %2606 = vmatprep.subr.mxu0 0.0
    %2607 = vmatpush1.msra.mxu0 %v1759
    %2608 = vmatprep.subr.mxu0 0.0
    %2609 = vmatpush1.msra.mxu0 %v1760
    %2610 = vmatprep.subr.mxu0 0.0
    %2611 = vmatpush1.msra.mxu0 %v1873
    %2612 = vmatprep.subr.mxu0 0.0
    %2613 = vmatpush1.msra.mxu0 %v1878
    %2614 = vmatprep.subr.mxu0 0.0
    %2615 = vmatpush1.msra.mxu0 %v1883
    %2616 = vmatprep.subr.mxu0 0.0
    %2617 = vmatpush1.msra.mxu0 %v1888
    %2618 = vmatprep.subr.mxu0 0.0
    %2619 = vmatpush1.msra.mxu0 %v1978
    %2620 = vmatprep.subr.mxu0 0.0
    %2621 = vmatpush1.msra.mxu0 %v1983
    %2622 = vmatprep.subr.mxu0 0.0
    %2623 = vmatpush1.msra.mxu0 %v1988
    %2624 = vmatprep.subr.mxu0 0.0
    %2625 = vmatpush1.msra.mxu0 %v1993
    %2626 = vmatprep.subr.mxu0 0.0
    %2627 = vmatpush1.msra.mxu0 %v2083
    %2628 = vmatprep.subr.mxu0 0.0
    %2629 = vmatpush1.msra.mxu0 %v2088
    %2630 = vmatprep.subr.mxu0 0.0
    %2631 = vmatpush1.msra.mxu0 %v2093
    %2632 = vmatprep.subr.mxu0 0.0
    %2633 = vmatpush1.msra.mxu0 %v2098
    %2634 = vmatprep.subr.mxu0 0.0
    %2635 = vmatpush1.msra.mxu0 %v2188
    %2636 = vmatprep.subr.mxu0 0.0
    %2637 = vmatpush1.msra.mxu0 %v2193
    %2638 = vmatprep.subr.mxu0 0.0
    %2639 = vmatpush1.msra.mxu0 %v2198
    %2640 = vmatprep.subr.mxu0 0.0
    %2641 = vmatpush1.msra.mxu0 %v2203
    %2642 = vmatprep.subr.mxu0 0.0
    %2643 = vmatpush1.msra.mxu0 %v2293
    %2644 = vmatprep.subr.mxu0 0.0
    %2645 = vmatpush1.msra.mxu0 %v2298
    %2646 = vmatprep.subr.mxu0 0.0
    %2647 = vmatpush1.msra.mxu0 %v2303
    %2648 = vmatprep.subr.mxu0 0.0
    %2649 = vmatpush1.msra.mxu0 %v2308
    %2650 = vmatprep.subr.mxu0 0.0
    %2651 = vmatpush1.msra.mxu0 %v2398
    %2652 = vmatprep.subr.mxu0 0.0
    %2653 = vmatpush1.msra.mxu0 %v2403
    %2654 = vmatprep.subr.mxu0 0.0
    %2655 = vmatpush1.msra.mxu0 %v2408
    %2656 = vmatprep.subr.mxu0 0.0
    %2657 = vmatpush1.msra.mxu0 %v2413
    %2658 = vmatprep.subr.mxu0 0.0
    %2659 = vmatpush1.msra.mxu0 %v2503
    %2660 = vmatprep.subr.mxu0 0.0
    %2661 = vmatpush1.msra.mxu0 %v2508
    %2662 = vmatprep.subr.mxu0 0.0
    %2663 = vmatpush1.msra.mxu0 %v2513
    %2664 = vmatprep.subr.mxu0 0.0
    %2665 = vmatpush1.msra.mxu0 %v2518
    %2666 = vmatprep.mubr.f32.mxu0 %v2529
    %2667 = vmatmul.mubr.f32.gmra.mrb[0].mxu0 %v2525
    %v2668 = vpop.f32.mrb[0].mxu0
    %v2669 = vadd.f32 0.0, %v2668
    %v2670 = vpop.f32.mrb[0].mxu0
    %2671 = vdwg.mxu0
    %v2673 = vrot.slane %v2669, 7
    %v2675 = vsel %vm590, %v2599, %v2673
    %v2676 = vmax.f32 %v2675, 0.0
    %vm2677 = vcmask 123904
    %2678 = vst.msk [vmem:[#allocation7] sm:$0x3] %vm2677, %v2676
    // Predicated region
    $region30: #{gnn_forward.1} parent=1 // pred_check
      _
    $region31: #{gnn_forward.1} parent=1 // pred_check_branch
      %2680 = sbr.rel (0) target = $region33
    $region32: #{gnn_forward.1} parent=1 // pred_region
      %s2682 = ssub.s32 32, 32
      %2683 = vsyncadd [#allocation4], %s2682
      %s2685 = sshll.u32 [#allocation7], 4
      %s2686 = int_to_ptr.vmem [resolvable:$true] %s2685
      %2688 = dma.vmem_to_hbm [thread:$0]  %s2686, 32, %s5, [#allocation4]
    $region33: #{gnn_forward.1} parent=1 // pred_fallthru
      _
    // Predicated region
    $region34: #{gnn_forward.1} parent=1 // pred_check
      _
    $region35: #{gnn_forward.1} parent=1 // pred_check_branch
      %2690 = sbr.rel (0) target = $region37
    $region36: #{gnn_forward.1} parent=1 // pred_region
      %2691 = dma.done [#allocation4], 32
    $region37: #{gnn_forward.1} parent=1 // pred_fallthru
      _
    %2692 = vsyncpa [#allocation3], 1
    %2693 = vsyncpa [#allocation6], 1
    %2694 = vsyncpa [#allocation4], 1

</llo_original>
